<compile_context>
chip_gen: v5e
topology: v5e:2x2
jax: 0.10.0
libtpu: 0.0.40
codegen_flags: <defaults>
</compile_context>

<pallas_src>
import itertools
import math

import jax
import jax.numpy as jnp
from jax import lax
from jax.experimental import pallas as pl
from jax.experimental.pallas import tpu as pltpu

LEAKY_SLOPE = 0.01   # nn.LeakyReLU default
BN_EPS = 1e-5        # nn.BatchNorm1d default


# ----------------------------------------------------------------------------
# Fused forward kernel builder (all structure is static / compile-time)
# ----------------------------------------------------------------------------
def make_fused_kernel(*, n_mod, present, ifmethy, has_cov, elbo_combn,
                      use_slope, use_intercept, log_input, latent_dim, batch):
    D = latent_dim
    B = batch
    C = len(elbo_combn)

    def softplus(v):
        # numerically stable softplus (max/exp/log/abs only)
        return jnp.maximum(v, 0.0) + jnp.log(1.0 + jnp.exp(-jnp.abs(v)))

    def fac_apply(onehot, table):
        # (B, n_d) one-hot  x  (n_d, in_ch) table -> (B, in_ch)
        # done as n_d broadcast multiply-accumulates (n_d is 2..3): avoids a
        # tiny-K MXU matmul and any HBM materialization of the (B, in_ch) adj.
        n_d = table.shape[0]
        out = onehot[:, 0:1] * table[0:1, :]
        for d in range(1, n_d):
            out = out + onehot[:, d:d + 1] * table[d:d + 1, :]
        return out

    def bn_lrelu(h, g, be):
        mean = jnp.mean(h, axis=0, keepdims=True)
        var = jnp.mean((h - mean) * (h - mean), axis=0, keepdims=True)
        h = (h - mean) * lax.rsqrt(var + BN_EPS) * g + be
        return jnp.maximum(h, LEAKY_SLOPE * h)          # LeakyReLU, one VALU op

    def kernel(*refs):
        it = iter(refs)
        mu2 = next(it)[...]            # (1, D)
        var2 = next(it)[...]           # (1, D)
        eps_ref = next(it)             # (C*B, D)

        mods = []
        for t in range(n_mod):
            if not present[t]:
                mods.append(None)
                continue
            m = {}
            m["x"] = next(it)
            if has_cov[t]:
                m["cov"] = next(it)
            m["onehot"] = next(it)
            m["beta"] = next(it)
            m["bd"] = next(it)         # beta_dataset      (n_d, in_ch)
            m["bdm"] = next(it)        # beta_dataset_mtp  (n_d, in_ch)
            m["w1a"] = next(it)
            if has_cov[t]:
                m["w1b"] = next(it)
            for name in ("b1", "g1", "be1", "w2", "b2", "g2", "be2",
                         "wmv", "bmv"):
                m[name] = next(it)
            mods.append(m)
        latent_out = next(it)          # SMEM (1,)
        recon_out = next(it)           # SMEM (1,)
        zstack = next(it)              # VMEM scratch (C*B, D)

        # ---------------- encoders (once per modality, all in VMEM) ----------
        precision = [None] * n_mod     # exp(-logvar)
        mu_prec = [None] * n_mod       # mu * exp(-logvar)
        x_val = [None] * n_mod
        cov_val = [None] * n_mod
        for t in range(n_mod):
            m = mods[t]
            if m is None:
                continue
            x_raw = m["x"][...]
            x_val[t] = x_raw
            xin = jnp.log(x_raw + 1.0) if log_input else x_raw
            # split-w1 trick: concat(x, cov) @ w1 == x @ w1a + cov @ w1b
            h = jnp.dot(xin, m["w1a"][...], preferred_element_type=jnp.float32)
            if has_cov[t]:
                c_raw = m["cov"][...]
                cov_val[t] = c_raw
                cin = jnp.log(c_raw + 1.0) if log_input else c_raw
                h = h + jnp.dot(cin, m["w1b"][...],
                                preferred_element_type=jnp.float32)
            h = bn_lrelu(h + m["b1"][...], m["g1"][...], m["be1"][...])
            h = jnp.dot(h, m["w2"][...],
                        preferred_element_type=jnp.float32) + m["b2"][...]
            h = bn_lrelu(h, m["g2"][...], m["be2"][...])
            # fused [fc_mu | fc_var] head
            muvar = jnp.dot(h, m["wmv"][...],
                            preferred_element_type=jnp.float32) + m["bmv"][...]
            prec = jnp.exp(-muvar[:, D:])
            precision[t] = prec
            mu_prec[t] = muvar[:, :D] * prec

        # ---------------- Product of Experts + KL + reparameterize -----------
        prior_T = 1.0 / var2                              # (1, D)
        prior_muT = mu2 * prior_T
        log_var2 = jnp.log(var2)
        prior_T_b = jnp.broadcast_to(prior_T, (B, D))     # hoisted out of loop
        prior_muT_b = jnp.broadcast_to(prior_muT, (B, D))
        eps_all = eps_ref[...]                            # (C*B, D)

        kl_acc = jnp.zeros((B, D), jnp.float32)           # vector accumulator
        for c, eb in enumerate(elbo_combn):
            sum_T = prior_T_b
            sum_muT = prior_muT_b
            for t in range(n_mod):
                if not eb[t]:
                    continue
                if precision[t] is None:
                    # absent modality contributed the prior expert in encode()
                    sum_T = sum_T + prior_T
                    sum_muT = sum_muT + prior_muT
                else:
                    sum_T = sum_T + precision[t]
                    sum_muT = sum_muT + mu_prec[t]
            pd_std = lax.rsqrt(sum_T)                     # one EUP op
            pd_var = pd_std * pd_std
            pd_mu = sum_muT * pd_var
            log_pd_var = -jnp.log(sum_T)
            diff = mu2 - pd_mu
            # NB: `- D` per element, reproducing latent_loss() literally.
            kl_acc = kl_acc + (pd_var * prior_T + diff * diff * prior_T
                               - jnp.float32(D) + log_var2 - log_pd_var)
            # stack z for this combination (sublane-aligned static slice)
            zstack[c * B:(c + 1) * B, :] = (
                eps_all[c * B:(c + 1) * B, :] * pd_std + pd_mu)

        # theta = softmax(z), ONE stacked exp over all combinations
        z_all = zstack[...]                               # (C*B, D)
        zm = jnp.max(z_all, axis=1, keepdims=True)
        ez = jnp.exp(z_all - zm)
        theta_all = ez / jnp.sum(ez, axis=1, keepdims=True)

        # ---------------- reconstruction losses ------------------------------
        recon_acc = jnp.float32(0.0)
        for t in range(n_mod):
            m = mods[t]
            if m is None:
                # TODO(synk): an ELBO combination selecting an absent modality
                # would crash in the reference PyTorch; such terms are skipped.
                continue
            sel = [c for c, eb in enumerate(elbo_combn) if eb[t]]
            if not sel:
                continue
            # ONE stacked MXU matmul per modality over all combinations.
            logits_all = jnp.dot(theta_all, m["beta"][...],
                                 preferred_element_type=jnp.float32)  # (C*B, in_ch)
            onehot = m["onehot"][...]
            # NB: flag swap reproduced literally from CoboltModel.forward()
            slope_fac = (fac_apply(onehot, m["bdm"][...]) + 1.0) if use_slope else None
            adj_int = fac_apply(onehot, m["bd"][...]) if use_intercept else None
            x_t = x_val[t]

            logits_bs = None          # block-sum of adjusted logits over combos
            if ifmethy[t]:
                sp_bs = None
                for c in sel:
                    L = logits_all[c * B:(c + 1) * B, :]
                    if use_slope:
                        L = L * slope_fac
                    if use_intercept:
                        L = L + adj_int
                    logits_bs = L if logits_bs is None else logits_bs + L
                    sp = softplus(L)                       # single softplus
                    sp_bs = sp if sp_bs is None else sp_bs + sp
                # -sum(x*logσ(l) + (cov-x)*log(1-σ(l))) == sum(cov*softplus(l) - x*l)
                recon_acc = recon_acc + jnp.sum(cov_val[t] * sp_bs
                                                - x_t * logits_bs)
            else:
                lse_bs = None
                for c in sel:
                    L = logits_all[c * B:(c + 1) * B, :]
                    if use_slope:
                        L = L * slope_fac
                    if use_intercept:
                        L = L + adj_int
                    logits_bs = L if logits_bs is None else logits_bs + L
                    lmax = jnp.max(L, axis=1, keepdims=True)
                    lse = jnp.log(jnp.sum(jnp.exp(L - lmax),
                                          axis=1, keepdims=True)) + lmax
                    lse_bs = lse if lse_bs is None else lse_bs + lse
                rowsum_x = jnp.sum(x_t, axis=1, keepdims=True)   # combo-invariant
                # -sum(x * log_softmax(l)) summed over combos
                recon_acc = recon_acc + (jnp.sum(rowsum_x * lse_bs)
                                         - jnp.sum(x_t * logits_bs))

        latent_out[0] = 0.5 * jnp.sum(kl_acc)
        recon_out[0] = recon_acc

    return kernel


# ----------------------------------------------------------------------------
# Forward pass wrapper (mirrors CoboltModel.forward), single pallas_call
# ----------------------------------------------------------------------------
def cobolt_forward(params, x_list, dataset, cov, ifmethy, key, *,
                   latent_dim, n_dataset, log=True,
                   intercept_adj=True, slope_adj=True, elbo_combn=None):
    n_mod = len(x_list)
    if elbo_combn is None:
        elbo_combn = [list(c) for c in itertools.product([False, True], repeat=n_mod)
                      if sum(c) != 0]
    present = [x is not None for x in x_list]
    has_cov = [present[t] and (cov[t] is not None) for t in range(n_mod)]
    B = [x.shape[0] for x in x_list if x is not None][0]
    C = len(elbo_combn)
    D = latent_dim

    # one batched normal draw covering every ELBO combination (replaces randn_like)
    eps_all = jax.random.normal(key, (C * B, D), jnp.float32)

    flat_inputs = [params["mu2"], params["var2"], eps_all]
    for t in range(n_mod):
        if not present[t]:
            continue
        x_t = x_list[t]
        in_ch = x_t.shape[1]
        e = params["enc"][t]
        flat_inputs.append(x_t)
        if has_cov[t]:
            flat_inputs.append(cov[t])
        # tiny (B, n_dataset) one-hot; the (B, in_ch) adj is built in-kernel
        onehot = jax.nn.one_hot(dataset[t], n_dataset[t], dtype=jnp.float32)
        flat_inputs += [onehot, params["beta"][t],
                        params["beta_dataset"][t], params["beta_dataset_mtp"][t]]
        if has_cov[t]:
            # split w1 so x/cov are DMA'd once (no concatenated x_enc copy)
            flat_inputs += [e["w1"][:in_ch], e["w1"][in_ch:]]
        else:
            flat_inputs.append(e["w1"])
        wmv = jnp.concatenate([e["wmu"], e["wvar"]], axis=1)   # fused mu|var head
        bmv = jnp.concatenate([e["bmu"], e["bvar"]], axis=1)
        flat_inputs += [e["b1"], e["g1"], e["be1"],
                        e["w2"], e["b2"], e["g2"], e["be2"], wmv, bmv]

    kernel = make_fused_kernel(
        n_mod=n_mod, present=present, ifmethy=ifmethy, has_cov=has_cov,
        elbo_combn=elbo_combn,
        use_slope=intercept_adj, use_intercept=slope_adj,  # swapped, per original
        log_input=log, latent_dim=D, batch=B)

    vmem = pl.BlockSpec(memory_space=pltpu.MemorySpace.VMEM)
    smem = pl.BlockSpec(memory_space=pltpu.MemorySpace.SMEM)
    latent_loss, recon_loss = pl.pallas_call(
        kernel,
        out_shape=(jax.ShapeDtypeStruct((1,), jnp.float32),
                   jax.ShapeDtypeStruct((1,), jnp.float32)),
        in_specs=[vmem] * len(flat_inputs),
        out_specs=(smem, smem),
        scratch_shapes=[pltpu.VMEM((C * B, D), jnp.float32)],
        compiler_params=pltpu.CompilerParams(vmem_limit_bytes=48 * 1024 * 1024),
    )(*flat_inputs)
    return latent_loss[0], recon_loss[0]


# ----------------------------------------------------------------------------
# Deterministic parameter initialization (mirrors __init__ shapes)
# ----------------------------------------------------------------------------
def xavier_init(key, fan_in, fan_out):
    high = math.sqrt(6.0 / (fan_in + fan_out))
    return jax.random.uniform(key, (fan_in, fan_out), jnp.float32, -high, high)


def linear_init(key, fan_in, fan_out):
    k1, k2 = jax.random.split(key)
    bound = 1.0 / math.sqrt(fan_in)
    w = jax.random.uniform(k1, (fan_in, fan_out), jnp.float32, -bound, bound)
    b = jax.random.uniform(k2, (1, fan_out), jnp.float32, -bound, bound)
    return w, b


def init_cobolt_params(key, in_channels, omic, latent_dim, n_dataset, hidden_dims,
                       alpha=None):
    if alpha is None:
        alpha = 50.0 / latent_dim
    a = alpha * jnp.ones((1, latent_dim), jnp.float32)
    log_a = jnp.log(a)
    mu2 = log_a - jnp.mean(log_a, axis=1)
    var2 = (1.0 / a) * (1.0 - 2.0 / latent_dim) \
           + (1.0 / (latent_dim * latent_dim)) * jnp.sum(1.0 / a, axis=1)

    params = {"mu2": mu2, "var2": var2, "beta": [],
              "beta_dataset": [], "beta_dataset_mtp": [], "enc": []}

    for in_ch, n_d in zip(in_channels, n_dataset):
        key, k1, k2, k3 = jax.random.split(key, 4)
        params["beta"].append(xavier_init(k1, latent_dim, in_ch))
        params["beta_dataset"].append(xavier_init(k2, n_d, in_ch))
        params["beta_dataset_mtp"].append(
            jax.random.uniform(k3, (n_d, in_ch), jnp.float32))

    omic_bool = [o == "Methy" for o in omic]
    in_channels2 = [c * 2 if b else c for b, c in zip(omic_bool, in_channels)]
    for in_ch in in_channels2:
        key, k1, k2, k3, k4 = jax.random.split(key, 5)
        w1, b1 = linear_init(k1, in_ch, hidden_dims[0])
        w2, b2 = linear_init(k2, hidden_dims[0], hidden_dims[1])
        wmu, bmu = linear_init(k3, hidden_dims[1], latent_dim)
        wvar, bvar = linear_init(k4, hidden_dims[1], latent_dim)
        params["enc"].append({
            "w1": w1, "b1": b1,
            "g1": jnp.ones((1, hidden_dims[0]), jnp.float32),
            "be1": jnp.zeros((1, hidden_dims[0]), jnp.float32),
            "w2": w2, "b2": b2,
            "g2": jnp.ones((1, hidden_dims[1]), jnp.float32),
            "be2": jnp.zeros((1, hidden_dims[1]), jnp.float32),
            "wmu": wmu, "bmu": bmu, "wvar": wvar, "bvar": bvar,
        })
    return params


# ----------------------------------------------------------------------------
if __name__ == "__main__":
    key = jax.random.PRNGKey(0)

    B = 8
    in_channels = [32, 16]
    omic = ["ATAC", "Methy"]
    ifmethy = [o == "Methy" for o in omic]
    latent_dim = 8
    n_dataset = [2, 3]
    hidden_dims = [32, 16]

    key, kp = jax.random.split(key)
    params = init_cobolt_params(kp, in_channels, omic, latent_dim, n_dataset,
                                hidden_dims)

    key, k0, k1, k2, kd0, kd1, kz = jax.random.split(key, 7)
    x0 = jnp.floor(jax.random.uniform(k0, (B, in_channels[0]), jnp.float32) * 5.0)
    x1 = jnp.floor(jax.random.uniform(k1, (B, in_channels[1]), jnp.float32) * 5.0)
    # binomial "total" covariate: >= x1 so the binomial loss is well defined
    cov1 = x1 + jnp.floor(jax.random.uniform(k2, (B, in_channels[1]),
                                             jnp.float32) * 5.0) + 1.0
    d0 = jax.random.randint(kd0, (B,), 0, n_dataset[0])
    d1 = jax.random.randint(kd1, (B,), 0, n_dataset[1])

    x_list = [x0, x1]
    dataset = [d0, d1]
    cov = [None, cov1]

    latent_loss, recon_loss = cobolt_forward(
        params, x_list, dataset, cov, ifmethy, kz,
        latent_dim=latent_dim, n_dataset=n_dataset, log=True,
        intercept_adj=True, slope_adj=True)

    jax.block_until_ready((latent_loss, recon_loss))
    assert bool(jnp.isfinite(latent_loss)) and bool(jnp.isfinite(recon_loss))
    print("KERNEL_OK")
</pallas_src>

<mosaic_0001>
module attributes {stable_mosaic.version = 11 : i64} {
  func.func @kernel(%arg0: memref<1x8xf32, #tpu.memory_space<vmem>>, %arg1: memref<1x8xf32, #tpu.memory_space<vmem>>, %arg2: memref<24x8xf32, #tpu.memory_space<vmem>>, %arg3: memref<8x32xf32, #tpu.memory_space<vmem>>, %arg4: memref<8x2xf32, #tpu.memory_space<vmem>>, %arg5: memref<8x32xf32, #tpu.memory_space<vmem>>, %arg6: memref<2x32xf32, #tpu.memory_space<vmem>>, %arg7: memref<2x32xf32, #tpu.memory_space<vmem>>, %arg8: memref<32x32xf32, #tpu.memory_space<vmem>>, %arg9: memref<1x32xf32, #tpu.memory_space<vmem>>, %arg10: memref<1x32xf32, #tpu.memory_space<vmem>>, %arg11: memref<1x32xf32, #tpu.memory_space<vmem>>, %arg12: memref<32x16xf32, #tpu.memory_space<vmem>>, %arg13: memref<1x16xf32, #tpu.memory_space<vmem>>, %arg14: memref<1x16xf32, #tpu.memory_space<vmem>>, %arg15: memref<1x16xf32, #tpu.memory_space<vmem>>, %arg16: memref<16x16xf32, #tpu.memory_space<vmem>>, %arg17: memref<1x16xf32, #tpu.memory_space<vmem>>, %arg18: memref<8x16xf32, #tpu.memory_space<vmem>>, %arg19: memref<8x16xf32, #tpu.memory_space<vmem>>, %arg20: memref<8x3xf32, #tpu.memory_space<vmem>>, %arg21: memref<8x16xf32, #tpu.memory_space<vmem>>, %arg22: memref<3x16xf32, #tpu.memory_space<vmem>>, %arg23: memref<3x16xf32, #tpu.memory_space<vmem>>, %arg24: memref<16x32xf32, #tpu.memory_space<vmem>>, %arg25: memref<16x32xf32, #tpu.memory_space<vmem>>, %arg26: memref<1x32xf32, #tpu.memory_space<vmem>>, %arg27: memref<1x32xf32, #tpu.memory_space<vmem>>, %arg28: memref<1x32xf32, #tpu.memory_space<vmem>>, %arg29: memref<32x16xf32, #tpu.memory_space<vmem>>, %arg30: memref<1x16xf32, #tpu.memory_space<vmem>>, %arg31: memref<1x16xf32, #tpu.memory_space<vmem>>, %arg32: memref<1x16xf32, #tpu.memory_space<vmem>>, %arg33: memref<16x16xf32, #tpu.memory_space<vmem>>, %arg34: memref<1x16xf32, #tpu.memory_space<vmem>>, %arg35: memref<1xf32, #tpu.memory_space<smem>>, %arg36: memref<1xf32, #tpu.memory_space<smem>>, %arg37: memref<24x8xf32, #tpu.memory_space<vmem>>) attributes {dimension_semantics = [], scalar_prefetch = 0 : i64, scratch_operands = 1 : i64, tpu.core_type = #tpu.core_type<tc>} {
    %c0 = arith.constant 0 : index
    %c0_0 = arith.constant 0 : index
    %0 = vector.load %arg0[%c0, %c0_0] : memref<1x8xf32, #tpu.memory_space<vmem>>, vector<1x8xf32>
    %c0_1 = arith.constant 0 : index
    %c0_2 = arith.constant 0 : index
    %1 = vector.load %arg1[%c0_1, %c0_2] : memref<1x8xf32, #tpu.memory_space<vmem>>, vector<1x8xf32>
    %c0_3 = arith.constant 0 : index
    %c0_4 = arith.constant 0 : index
    %2 = vector.load %arg3[%c0_3, %c0_4] : memref<8x32xf32, #tpu.memory_space<vmem>>, vector<8x32xf32>
    %cst = arith.constant 1.000000e+00 : f32
    %3 = vector.broadcast %cst : f32 to vector<8x32xf32>
    %4 = arith.addf %2, %3 : vector<8x32xf32>
    %5 = math.log %4 : vector<8x32xf32>
    %c0_5 = arith.constant 0 : index
    %c0_6 = arith.constant 0 : index
    %6 = vector.load %arg8[%c0_5, %c0_6] : memref<32x32xf32, #tpu.memory_space<vmem>>, vector<32x32xf32>
    %cst_7 = arith.constant dense<0.000000e+00> : vector<8x32xf32>
    %7 = tpu.matmul %5, %6, %cst_7 {dimension_numbers = #tpu.dot_dimension_numbers<[1], [0], [0], [1], [0, 0, 1, 1], [], []>} : vector<8x32xf32>, vector<32x32xf32>, vector<8x32xf32> -> vector<8x32xf32>
    %c0_8 = arith.constant 0 : index
    %c0_9 = arith.constant 0 : index
    %8 = vector.load %arg9[%c0_8, %c0_9] : memref<1x32xf32, #tpu.memory_space<vmem>>, vector<1x32xf32>
    %9 = vector.broadcast %8 : vector<1x32xf32> to vector<8x32xf32>
    %10 = arith.addf %7, %9 : vector<8x32xf32>
    %c0_10 = arith.constant 0 : index
    %c0_11 = arith.constant 0 : index
    %11 = vector.load %arg10[%c0_10, %c0_11] : memref<1x32xf32, #tpu.memory_space<vmem>>, vector<1x32xf32>
    %c0_12 = arith.constant 0 : index
    %c0_13 = arith.constant 0 : index
    %12 = vector.load %arg11[%c0_12, %c0_13] : memref<1x32xf32, #tpu.memory_space<vmem>>, vector<1x32xf32>
    %cst_14 = arith.constant dense<0.000000e+00> : vector<32xf32>
    %13 = vector.multi_reduction <add>, %10, %cst_14 [0] : vector<8x32xf32> to vector<32xf32>
    %14 = vector.shape_cast %13 : vector<32xf32> to vector<1x32xf32>
    %cst_15 = arith.constant 8.000000e+00 : f32
    %15 = vector.broadcast %cst_15 : f32 to vector<1x32xf32>
    %16 = arith.divf %14, %15 : vector<1x32xf32>
    %17 = vector.broadcast %16 : vector<1x32xf32> to vector<8x32xf32>
    %18 = arith.subf %10, %17 : vector<8x32xf32>
    %19 = vector.broadcast %16 : vector<1x32xf32> to vector<8x32xf32>
    %20 = arith.subf %10, %19 : vector<8x32xf32>
    %21 = arith.mulf %18, %20 : vector<8x32xf32>
    %cst_16 = arith.constant dense<0.000000e+00> : vector<32xf32>
    %22 = vector.multi_reduction <add>, %21, %cst_16 [0] : vector<8x32xf32> to vector<32xf32>
    %23 = vector.shape_cast %22 : vector<32xf32> to vector<1x32xf32>
    %cst_17 = arith.constant 8.000000e+00 : f32
    %24 = vector.broadcast %cst_17 : f32 to vector<1x32xf32>
    %25 = arith.divf %23, %24 : vector<1x32xf32>
    %26 = vector.broadcast %16 : vector<1x32xf32> to vector<8x32xf32>
    %27 = arith.subf %10, %26 : vector<8x32xf32>
    %cst_18 = arith.constant 9.99999974E-6 : f32
    %28 = vector.broadcast %cst_18 : f32 to vector<1x32xf32>
    %29 = arith.addf %25, %28 : vector<1x32xf32>
    %30 = math.rsqrt %29 : vector<1x32xf32>
    %31 = vector.broadcast %30 : vector<1x32xf32> to vector<8x32xf32>
    %32 = arith.mulf %27, %31 : vector<8x32xf32>
    %33 = vector.broadcast %11 : vector<1x32xf32> to vector<8x32xf32>
    %34 = arith.mulf %32, %33 : vector<8x32xf32>
    %35 = vector.broadcast %12 : vector<1x32xf32> to vector<8x32xf32>
    %36 = arith.addf %34, %35 : vector<8x32xf32>
    %cst_19 = arith.constant 0.00999999977 : f32
    %37 = vector.broadcast %cst_19 : f32 to vector<8x32xf32>
    %38 = arith.mulf %37, %36 : vector<8x32xf32>
    %39 = arith.maximumf %36, %38 : vector<8x32xf32>
    %c0_20 = arith.constant 0 : index
    %c0_21 = arith.constant 0 : index
    %40 = vector.load %arg12[%c0_20, %c0_21] : memref<32x16xf32, #tpu.memory_space<vmem>>, vector<32x16xf32>
    %cst_22 = arith.constant dense<0.000000e+00> : vector<8x16xf32>
    %41 = tpu.matmul %39, %40, %cst_22 {dimension_numbers = #tpu.dot_dimension_numbers<[1], [0], [0], [1], [0, 0, 1, 1], [], []>} : vector<8x32xf32>, vector<32x16xf32>, vector<8x16xf32> -> vector<8x16xf32>
    %c0_23 = arith.constant 0 : index
    %c0_24 = arith.constant 0 : index
    %42 = vector.load %arg13[%c0_23, %c0_24] : memref<1x16xf32, #tpu.memory_space<vmem>>, vector<1x16xf32>
    %43 = vector.broadcast %42 : vector<1x16xf32> to vector<8x16xf32>
    %44 = arith.addf %41, %43 : vector<8x16xf32>
    %c0_25 = arith.constant 0 : index
    %c0_26 = arith.constant 0 : index
    %45 = vector.load %arg14[%c0_25, %c0_26] : memref<1x16xf32, #tpu.memory_space<vmem>>, vector<1x16xf32>
    %c0_27 = arith.constant 0 : index
    %c0_28 = arith.constant 0 : index
    %46 = vector.load %arg15[%c0_27, %c0_28] : memref<1x16xf32, #tpu.memory_space<vmem>>, vector<1x16xf32>
    %cst_29 = arith.constant dense<0.000000e+00> : vector<16xf32>
    %47 = vector.multi_reduction <add>, %44, %cst_29 [0] : vector<8x16xf32> to vector<16xf32>
    %48 = vector.shape_cast %47 : vector<16xf32> to vector<1x16xf32>
    %cst_30 = arith.constant 8.000000e+00 : f32
    %49 = vector.broadcast %cst_30 : f32 to vector<1x16xf32>
    %50 = arith.divf %48, %49 : vector<1x16xf32>
    %51 = vector.broadcast %50 : vector<1x16xf32> to vector<8x16xf32>
    %52 = arith.subf %44, %51 : vector<8x16xf32>
    %53 = vector.broadcast %50 : vector<1x16xf32> to vector<8x16xf32>
    %54 = arith.subf %44, %53 : vector<8x16xf32>
    %55 = arith.mulf %52, %54 : vector<8x16xf32>
    %cst_31 = arith.constant dense<0.000000e+00> : vector<16xf32>
    %56 = vector.multi_reduction <add>, %55, %cst_31 [0] : vector<8x16xf32> to vector<16xf32>
    %57 = vector.shape_cast %56 : vector<16xf32> to vector<1x16xf32>
    %cst_32 = arith.constant 8.000000e+00 : f32
    %58 = vector.broadcast %cst_32 : f32 to vector<1x16xf32>
    %59 = arith.divf %57, %58 : vector<1x16xf32>
    %60 = vector.broadcast %50 : vector<1x16xf32> to vector<8x16xf32>
    %61 = arith.subf %44, %60 : vector<8x16xf32>
    %cst_33 = arith.constant 9.99999974E-6 : f32
    %62 = vector.broadcast %cst_33 : f32 to vector<1x16xf32>
    %63 = arith.addf %59, %62 : vector<1x16xf32>
    %64 = math.rsqrt %63 : vector<1x16xf32>
    %65 = vector.broadcast %64 : vector<1x16xf32> to vector<8x16xf32>
    %66 = arith.mulf %61, %65 : vector<8x16xf32>
    %67 = vector.broadcast %45 : vector<1x16xf32> to vector<8x16xf32>
    %68 = arith.mulf %66, %67 : vector<8x16xf32>
    %69 = vector.broadcast %46 : vector<1x16xf32> to vector<8x16xf32>
    %70 = arith.addf %68, %69 : vector<8x16xf32>
    %cst_34 = arith.constant 0.00999999977 : f32
    %71 = vector.broadcast %cst_34 : f32 to vector<8x16xf32>
    %72 = arith.mulf %71, %70 : vector<8x16xf32>
    %73 = arith.maximumf %70, %72 : vector<8x16xf32>
    %c0_35 = arith.constant 0 : index
    %c0_36 = arith.constant 0 : index
    %74 = vector.load %arg16[%c0_35, %c0_36] : memref<16x16xf32, #tpu.memory_space<vmem>>, vector<16x16xf32>
    %cst_37 = arith.constant dense<0.000000e+00> : vector<8x16xf32>
    %75 = tpu.matmul %73, %74, %cst_37 {dimension_numbers = #tpu.dot_dimension_numbers<[1], [0], [0], [1], [0, 0, 1, 1], [], []>} : vector<8x16xf32>, vector<16x16xf32>, vector<8x16xf32> -> vector<8x16xf32>
    %c0_38 = arith.constant 0 : index
    %c0_39 = arith.constant 0 : index
    %76 = vector.load %arg17[%c0_38, %c0_39] : memref<1x16xf32, #tpu.memory_space<vmem>>, vector<1x16xf32>
    %77 = vector.broadcast %76 : vector<1x16xf32> to vector<8x16xf32>
    %78 = arith.addf %75, %77 : vector<8x16xf32>
    %79 = vector.extract_strided_slice %78 {offsets = [0, 8], sizes = [8, 8], strides = [1, 1]} : vector<8x16xf32> to vector<8x8xf32>
    %cst_40 = arith.constant 0.000000e+00 : f32
    %80 = vector.broadcast %cst_40 : f32 to vector<8x8xf32>
    %81 = arith.subf %80, %79 : vector<8x8xf32>
    %82 = math.exp %81 : vector<8x8xf32>
    %83 = vector.extract_strided_slice %78 {offsets = [0, 0], sizes = [8, 8], strides = [1, 1]} : vector<8x16xf32> to vector<8x8xf32>
    %84 = arith.mulf %83, %82 : vector<8x8xf32>
    %c0_41 = arith.constant 0 : index
    %c0_42 = arith.constant 0 : index
    %85 = vector.load %arg18[%c0_41, %c0_42] : memref<8x16xf32, #tpu.memory_space<vmem>>, vector<8x16xf32>
    %cst_43 = arith.constant 1.000000e+00 : f32
    %86 = vector.broadcast %cst_43 : f32 to vector<8x16xf32>
    %87 = arith.addf %85, %86 : vector<8x16xf32>
    %88 = math.log %87 : vector<8x16xf32>
    %c0_44 = arith.constant 0 : index
    %c0_45 = arith.constant 0 : index
    %89 = vector.load %arg24[%c0_44, %c0_45] : memref<16x32xf32, #tpu.memory_space<vmem>>, vector<16x32xf32>
    %cst_46 = arith.constant dense<0.000000e+00> : vector<8x32xf32>
    %90 = tpu.matmul %88, %89, %cst_46 {dimension_numbers = #tpu.dot_dimension_numbers<[1], [0], [0], [1], [0, 0, 1, 1], [], []>} : vector<8x16xf32>, vector<16x32xf32>, vector<8x32xf32> -> vector<8x32xf32>
    %c0_47 = arith.constant 0 : index
    %c0_48 = arith.constant 0 : index
    %91 = vector.load %arg19[%c0_47, %c0_48] : memref<8x16xf32, #tpu.memory_space<vmem>>, vector<8x16xf32>
    %cst_49 = arith.constant 1.000000e+00 : f32
    %92 = vector.broadcast %cst_49 : f32 to vector<8x16xf32>
    %93 = arith.addf %91, %92 : vector<8x16xf32>
    %94 = math.log %93 : vector<8x16xf32>
    %c0_50 = arith.constant 0 : index
    %c0_51 = arith.constant 0 : index
    %95 = vector.load %arg25[%c0_50, %c0_51] : memref<16x32xf32, #tpu.memory_space<vmem>>, vector<16x32xf32>
    %cst_52 = arith.constant dense<0.000000e+00> : vector<8x32xf32>
    %96 = tpu.matmul %94, %95, %cst_52 {dimension_numbers = #tpu.dot_dimension_numbers<[1], [0], [0], [1], [0, 0, 1, 1], [], []>} : vector<8x16xf32>, vector<16x32xf32>, vector<8x32xf32> -> vector<8x32xf32>
    %97 = arith.addf %90, %96 : vector<8x32xf32>
    %c0_53 = arith.constant 0 : index
    %c0_54 = arith.constant 0 : index
    %98 = vector.load %arg26[%c0_53, %c0_54] : memref<1x32xf32, #tpu.memory_space<vmem>>, vector<1x32xf32>
    %99 = vector.broadcast %98 : vector<1x32xf32> to vector<8x32xf32>
    %100 = arith.addf %97, %99 : vector<8x32xf32>
    %c0_55 = arith.constant 0 : index
    %c0_56 = arith.constant 0 : index
    %101 = vector.load %arg27[%c0_55, %c0_56] : memref<1x32xf32, #tpu.memory_space<vmem>>, vector<1x32xf32>
    %c0_57 = arith.constant 0 : index
    %c0_58 = arith.constant 0 : index
    %102 = vector.load %arg28[%c0_57, %c0_58] : memref<1x32xf32, #tpu.memory_space<vmem>>, vector<1x32xf32>
    %cst_59 = arith.constant dense<0.000000e+00> : vector<32xf32>
    %103 = vector.multi_reduction <add>, %100, %cst_59 [0] : vector<8x32xf32> to vector<32xf32>
    %104 = vector.shape_cast %103 : vector<32xf32> to vector<1x32xf32>
    %cst_60 = arith.constant 8.000000e+00 : f32
    %105 = vector.broadcast %cst_60 : f32 to vector<1x32xf32>
    %106 = arith.divf %104, %105 : vector<1x32xf32>
    %107 = vector.broadcast %106 : vector<1x32xf32> to vector<8x32xf32>
    %108 = arith.subf %100, %107 : vector<8x32xf32>
    %109 = vector.broadcast %106 : vector<1x32xf32> to vector<8x32xf32>
    %110 = arith.subf %100, %109 : vector<8x32xf32>
    %111 = arith.mulf %108, %110 : vector<8x32xf32>
    %cst_61 = arith.constant dense<0.000000e+00> : vector<32xf32>
    %112 = vector.multi_reduction <add>, %111, %cst_61 [0] : vector<8x32xf32> to vector<32xf32>
    %113 = vector.shape_cast %112 : vector<32xf32> to vector<1x32xf32>
    %cst_62 = arith.constant 8.000000e+00 : f32
    %114 = vector.broadcast %cst_62 : f32 to vector<1x32xf32>
    %115 = arith.divf %113, %114 : vector<1x32xf32>
    %116 = vector.broadcast %106 : vector<1x32xf32> to vector<8x32xf32>
    %117 = arith.subf %100, %116 : vector<8x32xf32>
    %cst_63 = arith.constant 9.99999974E-6 : f32
    %118 = vector.broadcast %cst_63 : f32 to vector<1x32xf32>
    %119 = arith.addf %115, %118 : vector<1x32xf32>
    %120 = math.rsqrt %119 : vector<1x32xf32>
    %121 = vector.broadcast %120 : vector<1x32xf32> to vector<8x32xf32>
    %122 = arith.mulf %117, %121 : vector<8x32xf32>
    %123 = vector.broadcast %101 : vector<1x32xf32> to vector<8x32xf32>
    %124 = arith.mulf %122, %123 : vector<8x32xf32>
    %125 = vector.broadcast %102 : vector<1x32xf32> to vector<8x32xf32>
    %126 = arith.addf %124, %125 : vector<8x32xf32>
    %cst_64 = arith.constant 0.00999999977 : f32
    %127 = vector.broadcast %cst_64 : f32 to vector<8x32xf32>
    %128 = arith.mulf %127, %126 : vector<8x32xf32>
    %129 = arith.maximumf %126, %128 : vector<8x32xf32>
    %c0_65 = arith.constant 0 : index
    %c0_66 = arith.constant 0 : index
    %130 = vector.load %arg29[%c0_65, %c0_66] : memref<32x16xf32, #tpu.memory_space<vmem>>, vector<32x16xf32>
    %cst_67 = arith.constant dense<0.000000e+00> : vector<8x16xf32>
    %131 = tpu.matmul %129, %130, %cst_67 {dimension_numbers = #tpu.dot_dimension_numbers<[1], [0], [0], [1], [0, 0, 1, 1], [], []>} : vector<8x32xf32>, vector<32x16xf32>, vector<8x16xf32> -> vector<8x16xf32>
    %c0_68 = arith.constant 0 : index
    %c0_69 = arith.constant 0 : index
    %132 = vector.load %arg30[%c0_68, %c0_69] : memref<1x16xf32, #tpu.memory_space<vmem>>, vector<1x16xf32>
    %133 = vector.broadcast %132 : vector<1x16xf32> to vector<8x16xf32>
    %134 = arith.addf %131, %133 : vector<8x16xf32>
    %c0_70 = arith.constant 0 : index
    %c0_71 = arith.constant 0 : index
    %135 = vector.load %arg31[%c0_70, %c0_71] : memref<1x16xf32, #tpu.memory_space<vmem>>, vector<1x16xf32>
    %c0_72 = arith.constant 0 : index
    %c0_73 = arith.constant 0 : index
    %136 = vector.load %arg32[%c0_72, %c0_73] : memref<1x16xf32, #tpu.memory_space<vmem>>, vector<1x16xf32>
    %cst_74 = arith.constant dense<0.000000e+00> : vector<16xf32>
    %137 = vector.multi_reduction <add>, %134, %cst_74 [0] : vector<8x16xf32> to vector<16xf32>
    %138 = vector.shape_cast %137 : vector<16xf32> to vector<1x16xf32>
    %cst_75 = arith.constant 8.000000e+00 : f32
    %139 = vector.broadcast %cst_75 : f32 to vector<1x16xf32>
    %140 = arith.divf %138, %139 : vector<1x16xf32>
    %141 = vector.broadcast %140 : vector<1x16xf32> to vector<8x16xf32>
    %142 = arith.subf %134, %141 : vector<8x16xf32>
    %143 = vector.broadcast %140 : vector<1x16xf32> to vector<8x16xf32>
    %144 = arith.subf %134, %143 : vector<8x16xf32>
    %145 = arith.mulf %142, %144 : vector<8x16xf32>
    %cst_76 = arith.constant dense<0.000000e+00> : vector<16xf32>
    %146 = vector.multi_reduction <add>, %145, %cst_76 [0] : vector<8x16xf32> to vector<16xf32>
    %147 = vector.shape_cast %146 : vector<16xf32> to vector<1x16xf32>
    %cst_77 = arith.constant 8.000000e+00 : f32
    %148 = vector.broadcast %cst_77 : f32 to vector<1x16xf32>
    %149 = arith.divf %147, %148 : vector<1x16xf32>
    %150 = vector.broadcast %140 : vector<1x16xf32> to vector<8x16xf32>
    %151 = arith.subf %134, %150 : vector<8x16xf32>
    %cst_78 = arith.constant 9.99999974E-6 : f32
    %152 = vector.broadcast %cst_78 : f32 to vector<1x16xf32>
    %153 = arith.addf %149, %152 : vector<1x16xf32>
    %154 = math.rsqrt %153 : vector<1x16xf32>
    %155 = vector.broadcast %154 : vector<1x16xf32> to vector<8x16xf32>
    %156 = arith.mulf %151, %155 : vector<8x16xf32>
    %157 = vector.broadcast %135 : vector<1x16xf32> to vector<8x16xf32>
    %158 = arith.mulf %156, %157 : vector<8x16xf32>
    %159 = vector.broadcast %136 : vector<1x16xf32> to vector<8x16xf32>
    %160 = arith.addf %158, %159 : vector<8x16xf32>
    %cst_79 = arith.constant 0.00999999977 : f32
    %161 = vector.broadcast %cst_79 : f32 to vector<8x16xf32>
    %162 = arith.mulf %161, %160 : vector<8x16xf32>
    %163 = arith.maximumf %160, %162 : vector<8x16xf32>
    %c0_80 = arith.constant 0 : index
    %c0_81 = arith.constant 0 : index
    %164 = vector.load %arg33[%c0_80, %c0_81] : memref<16x16xf32, #tpu.memory_space<vmem>>, vector<16x16xf32>
    %cst_82 = arith.constant dense<0.000000e+00> : vector<8x16xf32>
    %165 = tpu.matmul %163, %164, %cst_82 {dimension_numbers = #tpu.dot_dimension_numbers<[1], [0], [0], [1], [0, 0, 1, 1], [], []>} : vector<8x16xf32>, vector<16x16xf32>, vector<8x16xf32> -> vector<8x16xf32>
    %c0_83 = arith.constant 0 : index
    %c0_84 = arith.constant 0 : index
    %166 = vector.load %arg34[%c0_83, %c0_84] : memref<1x16xf32, #tpu.memory_space<vmem>>, vector<1x16xf32>
    %167 = vector.broadcast %166 : vector<1x16xf32> to vector<8x16xf32>
    %168 = arith.addf %165, %167 : vector<8x16xf32>
    %169 = vector.extract_strided_slice %168 {offsets = [0, 8], sizes = [8, 8], strides = [1, 1]} : vector<8x16xf32> to vector<8x8xf32>
    %cst_85 = arith.constant 0.000000e+00 : f32
    %170 = vector.broadcast %cst_85 : f32 to vector<8x8xf32>
    %171 = arith.subf %170, %169 : vector<8x8xf32>
    %172 = math.exp %171 : vector<8x8xf32>
    %173 = vector.extract_strided_slice %168 {offsets = [0, 0], sizes = [8, 8], strides = [1, 1]} : vector<8x16xf32> to vector<8x8xf32>
    %174 = arith.mulf %173, %172 : vector<8x8xf32>
    %cst_86 = arith.constant 1.000000e+00 : f32
    %175 = vector.broadcast %cst_86 : f32 to vector<1x8xf32>
    %176 = arith.divf %175, %1 : vector<1x8xf32>
    %177 = arith.mulf %0, %176 : vector<1x8xf32>
    %178 = math.log %1 : vector<1x8xf32>
    %179 = vector.shape_cast %176 : vector<1x8xf32> to vector<1x8xf32>
    %180 = vector.broadcast %179 : vector<1x8xf32> to vector<8x8xf32>
    %181 = vector.shape_cast %177 : vector<1x8xf32> to vector<1x8xf32>
    %182 = vector.broadcast %181 : vector<1x8xf32> to vector<8x8xf32>
    %c0_87 = arith.constant 0 : index
    %c0_88 = arith.constant 0 : index
    %183 = vector.load %arg2[%c0_87, %c0_88] : memref<24x8xf32, #tpu.memory_space<vmem>>, vector<24x8xf32>
    %cst_89 = arith.constant 0.000000e+00 : f32
    %184 = vector.broadcast %cst_89 : f32 to vector<8x8xf32>
    %185 = arith.addf %180, %172 : vector<8x8xf32>
    %186 = arith.addf %182, %174 : vector<8x8xf32>
    %187 = math.rsqrt %185 : vector<8x8xf32>
    %188 = arith.mulf %187, %187 : vector<8x8xf32>
    %189 = arith.mulf %186, %188 : vector<8x8xf32>
    %190 = math.log %185 : vector<8x8xf32>
    %cst_90 = arith.constant 0.000000e+00 : f32
    %191 = vector.broadcast %cst_90 : f32 to vector<8x8xf32>
    %192 = arith.subf %191, %190 : vector<8x8xf32>
    %193 = vector.broadcast %0 : vector<1x8xf32> to vector<8x8xf32>
    %194 = arith.subf %193, %189 : vector<8x8xf32>
    %195 = vector.broadcast %176 : vector<1x8xf32> to vector<8x8xf32>
    %196 = arith.mulf %188, %195 : vector<8x8xf32>
    %197 = arith.mulf %194, %194 : vector<8x8xf32>
    %198 = vector.broadcast %176 : vector<1x8xf32> to vector<8x8xf32>
    %199 = arith.mulf %197, %198 : vector<8x8xf32>
    %200 = arith.addf %196, %199 : vector<8x8xf32>
    %cst_91 = arith.constant 8.000000e+00 : f32
    %201 = vector.broadcast %cst_91 : f32 to vector<8x8xf32>
    %202 = arith.subf %200, %201 : vector<8x8xf32>
    %203 = vector.broadcast %178 : vector<1x8xf32> to vector<8x8xf32>
    %204 = arith.addf %202, %203 : vector<8x8xf32>
    %205 = arith.subf %204, %192 : vector<8x8xf32>
    %206 = arith.addf %184, %205 : vector<8x8xf32>
    %207 = vector.extract_strided_slice %183 {offsets = [0, 0], sizes = [8, 8], strides = [1, 1]} : vector<24x8xf32> to vector<8x8xf32>
    %208 = arith.mulf %207, %187 : vector<8x8xf32>
    %209 = arith.addf %208, %189 : vector<8x8xf32>
    %c0_92 = arith.constant 0 : index
    %c0_93 = arith.constant 0 : index
    %210 = vector.load %arg37[%c0_92, %c0_93] : memref<24x8xf32, #tpu.memory_space<vmem>>, vector<8x8xf32>
    tpu.vector_store %arg37[%c0_92, %c0_93], %209 {strides = array<i32>} : memref<24x8xf32, #tpu.memory_space<vmem>>, vector<8x8xf32>,
    %211 = arith.addf %180, %82 : vector<8x8xf32>
    %212 = arith.addf %182, %84 : vector<8x8xf32>
    %213 = math.rsqrt %211 : vector<8x8xf32>
    %214 = arith.mulf %213, %213 : vector<8x8xf32>
    %215 = arith.mulf %212, %214 : vector<8x8xf32>
    %216 = math.log %211 : vector<8x8xf32>
    %cst_94 = arith.constant 0.000000e+00 : f32
    %217 = vector.broadcast %cst_94 : f32 to vector<8x8xf32>
    %218 = arith.subf %217, %216 : vector<8x8xf32>
    %219 = vector.broadcast %0 : vector<1x8xf32> to vector<8x8xf32>
    %220 = arith.subf %219, %215 : vector<8x8xf32>
    %221 = vector.broadcast %176 : vector<1x8xf32> to vector<8x8xf32>
    %222 = arith.mulf %214, %221 : vector<8x8xf32>
    %223 = arith.mulf %220, %220 : vector<8x8xf32>
    %224 = vector.broadcast %176 : vector<1x8xf32> to vector<8x8xf32>
    %225 = arith.mulf %223, %224 : vector<8x8xf32>
    %226 = arith.addf %222, %225 : vector<8x8xf32>
    %cst_95 = arith.constant 8.000000e+00 : f32
    %227 = vector.broadcast %cst_95 : f32 to vector<8x8xf32>
    %228 = arith.subf %226, %227 : vector<8x8xf32>
    %229 = vector.broadcast %178 : vector<1x8xf32> to vector<8x8xf32>
    %230 = arith.addf %228, %229 : vector<8x8xf32>
    %231 = arith.subf %230, %218 : vector<8x8xf32>
    %232 = arith.addf %206, %231 : vector<8x8xf32>
    %233 = vector.extract_strided_slice %183 {offsets = [8, 0], sizes = [8, 8], strides = [1, 1]} : vector<24x8xf32> to vector<8x8xf32>
    %234 = arith.mulf %233, %213 : vector<8x8xf32>
    %235 = arith.addf %234, %215 : vector<8x8xf32>
    %c8 = arith.constant 8 : index
    %c0_96 = arith.constant 0 : index
    %236 = vector.load %arg37[%c8, %c0_96] : memref<24x8xf32, #tpu.memory_space<vmem>>, vector<8x8xf32>
    tpu.vector_store %arg37[%c8, %c0_96], %235 {strides = array<i32>} : memref<24x8xf32, #tpu.memory_space<vmem>>, vector<8x8xf32>,
    %237 = arith.addf %180, %82 : vector<8x8xf32>
    %238 = arith.addf %182, %84 : vector<8x8xf32>
    %239 = arith.addf %237, %172 : vector<8x8xf32>
    %240 = arith.addf %238, %174 : vector<8x8xf32>
    %241 = math.rsqrt %239 : vector<8x8xf32>
    %242 = arith.mulf %241, %241 : vector<8x8xf32>
    %243 = arith.mulf %240, %242 : vector<8x8xf32>
    %244 = math.log %239 : vector<8x8xf32>
    %cst_97 = arith.constant 0.000000e+00 : f32
    %245 = vector.broadcast %cst_97 : f32 to vector<8x8xf32>
    %246 = arith.subf %245, %244 : vector<8x8xf32>
    %247 = vector.broadcast %0 : vector<1x8xf32> to vector<8x8xf32>
    %248 = arith.subf %247, %243 : vector<8x8xf32>
    %249 = vector.broadcast %176 : vector<1x8xf32> to vector<8x8xf32>
    %250 = arith.mulf %242, %249 : vector<8x8xf32>
    %251 = arith.mulf %248, %248 : vector<8x8xf32>
    %252 = vector.broadcast %176 : vector<1x8xf32> to vector<8x8xf32>
    %253 = arith.mulf %251, %252 : vector<8x8xf32>
    %254 = arith.addf %250, %253 : vector<8x8xf32>
    %cst_98 = arith.constant 8.000000e+00 : f32
    %255 = vector.broadcast %cst_98 : f32 to vector<8x8xf32>
    %256 = arith.subf %254, %255 : vector<8x8xf32>
    %257 = vector.broadcast %178 : vector<1x8xf32> to vector<8x8xf32>
    %258 = arith.addf %256, %257 : vector<8x8xf32>
    %259 = arith.subf %258, %246 : vector<8x8xf32>
    %260 = arith.addf %232, %259 : vector<8x8xf32>
    %261 = vector.extract_strided_slice %183 {offsets = [16, 0], sizes = [8, 8], strides = [1, 1]} : vector<24x8xf32> to vector<8x8xf32>
    %262 = arith.mulf %261, %241 : vector<8x8xf32>
    %263 = arith.addf %262, %243 : vector<8x8xf32>
    %c16 = arith.constant 16 : index
    %c0_99 = arith.constant 0 : index
    %264 = vector.load %arg37[%c16, %c0_99] : memref<24x8xf32, #tpu.memory_space<vmem>>, vector<8x8xf32>
    tpu.vector_store %arg37[%c16, %c0_99], %263 {strides = array<i32>} : memref<24x8xf32, #tpu.memory_space<vmem>>, vector<8x8xf32>,
    %c0_100 = arith.constant 0 : index
    %c0_101 = arith.constant 0 : index
    %265 = vector.load %arg37[%c0_100, %c0_101] : memref<24x8xf32, #tpu.memory_space<vmem>>, vector<24x8xf32>
    %cst_102 = arith.constant dense<0xFF800000> : vector<24xf32>
    %266 = vector.multi_reduction <maximumf>, %265, %cst_102 [1] : vector<24x8xf32> to vector<24xf32>
    %267 = vector.shape_cast %266 : vector<24xf32> to vector<24x1xf32>
    %268 = vector.broadcast %267 : vector<24x1xf32> to vector<24x8xf32>
    %269 = arith.subf %265, %268 : vector<24x8xf32>
    %270 = math.exp %269 : vector<24x8xf32>
    %cst_103 = arith.constant dense<0.000000e+00> : vector<24xf32>
    %271 = vector.multi_reduction <add>, %270, %cst_103 [1] : vector<24x8xf32> to vector<24xf32>
    %272 = vector.shape_cast %271 : vector<24xf32> to vector<24x1xf32>
    %273 = vector.broadcast %272 : vector<24x1xf32> to vector<24x8xf32>
    %274 = arith.divf %270, %273 : vector<24x8xf32>
    %c0_104 = arith.constant 0 : index
    %c0_105 = arith.constant 0 : index
    %275 = vector.load %arg5[%c0_104, %c0_105] : memref<8x32xf32, #tpu.memory_space<vmem>>, vector<8x32xf32>
    %cst_106 = arith.constant dense<0.000000e+00> : vector<24x32xf32>
    %276 = tpu.matmul %274, %275, %cst_106 {dimension_numbers = #tpu.dot_dimension_numbers<[1], [0], [0], [1], [0, 0, 1, 1], [], []>} : vector<24x8xf32>, vector<8x32xf32>, vector<24x32xf32> -> vector<24x32xf32>
    %c0_107 = arith.constant 0 : index
    %c0_108 = arith.constant 0 : index
    %277 = vector.load %arg4[%c0_107, %c0_108] : memref<8x2xf32, #tpu.memory_space<vmem>>, vector<8x2xf32>
    %c0_109 = arith.constant 0 : index
    %c0_110 = arith.constant 0 : index
    %278 = vector.load %arg7[%c0_109, %c0_110] : memref<2x32xf32, #tpu.memory_space<vmem>>, vector<2x32xf32>
    %279 = vector.extract_strided_slice %277 {offsets = [0, 0], sizes = [8, 1], strides = [1, 1]} : vector<8x2xf32> to vector<8x1xf32>
    %280 = vector.extract_strided_slice %278 {offsets = [0, 0], sizes = [1, 32], strides = [1, 1]} : vector<2x32xf32> to vector<1x32xf32>
    %281 = vector.broadcast %279 : vector<8x1xf32> to vector<8x32xf32>
    %282 = vector.broadcast %280 : vector<1x32xf32> to vector<8x32xf32>
    %283 = arith.mulf %281, %282 : vector<8x32xf32>
    %284 = vector.extract_strided_slice %277 {offsets = [0, 1], sizes = [8, 1], strides = [1, 1]} : vector<8x2xf32> to vector<8x1xf32>
    %285 = vector.extract_strided_slice %278 {offsets = [1, 0], sizes = [1, 32], strides = [1, 1]} : vector<2x32xf32> to vector<1x32xf32>
    %286 = vector.broadcast %284 : vector<8x1xf32> to vector<8x32xf32>
    %287 = vector.broadcast %285 : vector<1x32xf32> to vector<8x32xf32>
    %288 = arith.mulf %286, %287 : vector<8x32xf32>
    %289 = arith.addf %283, %288 : vector<8x32xf32>
    %cst_111 = arith.constant 1.000000e+00 : f32
    %290 = vector.broadcast %cst_111 : f32 to vector<8x32xf32>
    %291 = arith.addf %289, %290 : vector<8x32xf32>
    %c0_112 = arith.constant 0 : index
    %c0_113 = arith.constant 0 : index
    %292 = vector.load %arg6[%c0_112, %c0_113] : memref<2x32xf32, #tpu.memory_space<vmem>>, vector<2x32xf32>
    %293 = vector.extract_strided_slice %277 {offsets = [0, 0], sizes = [8, 1], strides = [1, 1]} : vector<8x2xf32> to vector<8x1xf32>
    %294 = vector.extract_strided_slice %292 {offsets = [0, 0], sizes = [1, 32], strides = [1, 1]} : vector<2x32xf32> to vector<1x32xf32>
    %295 = vector.broadcast %293 : vector<8x1xf32> to vector<8x32xf32>
    %296 = vector.broadcast %294 : vector<1x32xf32> to vector<8x32xf32>
    %297 = arith.mulf %295, %296 : vector<8x32xf32>
    %298 = vector.extract_strided_slice %277 {offsets = [0, 1], sizes = [8, 1], strides = [1, 1]} : vector<8x2xf32> to vector<8x1xf32>
    %299 = vector.extract_strided_slice %292 {offsets = [1, 0], sizes = [1, 32], strides = [1, 1]} : vector<2x32xf32> to vector<1x32xf32>
    %300 = vector.broadcast %298 : vector<8x1xf32> to vector<8x32xf32>
    %301 = vector.broadcast %299 : vector<1x32xf32> to vector<8x32xf32>
    %302 = arith.mulf %300, %301 : vector<8x32xf32>
    %303 = arith.addf %297, %302 : vector<8x32xf32>
    %304 = vector.extract_strided_slice %276 {offsets = [8, 0], sizes = [8, 32], strides = [1, 1]} : vector<24x32xf32> to vector<8x32xf32>
    %305 = arith.mulf %304, %291 : vector<8x32xf32>
    %306 = arith.addf %305, %303 : vector<8x32xf32>
    %cst_114 = arith.constant dense<0xFF800000> : vector<8xf32>
    %307 = vector.multi_reduction <maximumf>, %306, %cst_114 [1] : vector<8x32xf32> to vector<8xf32>
    %308 = vector.shape_cast %307 : vector<8xf32> to vector<8x1xf32>
    %309 = vector.broadcast %308 : vector<8x1xf32> to vector<8x32xf32>
    %310 = arith.subf %306, %309 : vector<8x32xf32>
    %311 = math.exp %310 : vector<8x32xf32>
    %cst_115 = arith.constant dense<0.000000e+00> : vector<8xf32>
    %312 = vector.multi_reduction <add>, %311, %cst_115 [1] : vector<8x32xf32> to vector<8xf32>
    %313 = vector.shape_cast %312 : vector<8xf32> to vector<8x1xf32>
    %314 = math.log %313 : vector<8x1xf32>
    %315 = arith.addf %314, %308 : vector<8x1xf32>
    %316 = vector.extract_strided_slice %276 {offsets = [16, 0], sizes = [8, 32], strides = [1, 1]} : vector<24x32xf32> to vector<8x32xf32>
    %317 = arith.mulf %316, %291 : vector<8x32xf32>
    %318 = arith.addf %317, %303 : vector<8x32xf32>
    %319 = arith.addf %306, %318 : vector<8x32xf32>
    %cst_116 = arith.constant dense<0xFF800000> : vector<8xf32>
    %320 = vector.multi_reduction <maximumf>, %318, %cst_116 [1] : vector<8x32xf32> to vector<8xf32>
    %321 = vector.shape_cast %320 : vector<8xf32> to vector<8x1xf32>
    %322 = vector.broadcast %321 : vector<8x1xf32> to vector<8x32xf32>
    %323 = arith.subf %318, %322 : vector<8x32xf32>
    %324 = math.exp %323 : vector<8x32xf32>
    %cst_117 = arith.constant dense<0.000000e+00> : vector<8xf32>
    %325 = vector.multi_reduction <add>, %324, %cst_117 [1] : vector<8x32xf32> to vector<8xf32>
    %326 = vector.shape_cast %325 : vector<8xf32> to vector<8x1xf32>
    %327 = math.log %326 : vector<8x1xf32>
    %328 = arith.addf %327, %321 : vector<8x1xf32>
    %329 = arith.addf %315, %328 : vector<8x1xf32>
    %cst_118 = arith.constant dense<0.000000e+00> : vector<8xf32>
    %330 = vector.multi_reduction <add>, %2, %cst_118 [1] : vector<8x32xf32> to vector<8xf32>
    %331 = vector.shape_cast %330 : vector<8xf32> to vector<8x1xf32>
    %332 = arith.mulf %331, %329 : vector<8x1xf32>
    %333 = vector.shape_cast %332 : vector<8x1xf32> to vector<1x8x1xf32>
    %cst_119 = arith.constant dense<0.000000e+00> : vector<1xf32>
    %334 = vector.multi_reduction <add>, %333, %cst_119 [1, 2] : vector<1x8x1xf32> to vector<1xf32>
    %335 = vector.shape_cast %334 : vector<1xf32> to vector<1x1x1xf32>
    %336 = vector.extract %335[0, 0, 0] : f32 from vector<1x1x1xf32>
    %337 = arith.mulf %2, %319 : vector<8x32xf32>
    %338 = vector.shape_cast %337 : vector<8x32xf32> to vector<1x8x32xf32>
    %cst_120 = arith.constant dense<0.000000e+00> : vector<1xf32>
    %339 = vector.multi_reduction <add>, %338, %cst_120 [1, 2] : vector<1x8x32xf32> to vector<1xf32>
    %340 = vector.shape_cast %339 : vector<1xf32> to vector<1x1x1xf32>
    %341 = vector.extract %340[0, 0, 0] : f32 from vector<1x1x1xf32>
    %342 = arith.subf %336, %341 : f32
    %cst_121 = arith.constant 0.000000e+00 : f32
    %343 = arith.addf %cst_121, %342 : f32
    %c0_122 = arith.constant 0 : index
    %c0_123 = arith.constant 0 : index
    %344 = vector.load %arg21[%c0_122, %c0_123] : memref<8x16xf32, #tpu.memory_space<vmem>>, vector<8x16xf32>
    %cst_124 = arith.constant dense<0.000000e+00> : vector<24x16xf32>
    %345 = tpu.matmul %274, %344, %cst_124 {dimension_numbers = #tpu.dot_dimension_numbers<[1], [0], [0], [1], [0, 0, 1, 1], [], []>} : vector<24x8xf32>, vector<8x16xf32>, vector<24x16xf32> -> vector<24x16xf32>
    %c0_125 = arith.constant 0 : index
    %c0_126 = arith.constant 0 : index
    %346 = vector.load %arg20[%c0_125, %c0_126] : memref<8x3xf32, #tpu.memory_space<vmem>>, vector<8x3xf32>
    %c0_127 = arith.constant 0 : index
    %c0_128 = arith.constant 0 : index
    %347 = vector.load %arg23[%c0_127, %c0_128] : memref<3x16xf32, #tpu.memory_space<vmem>>, vector<3x16xf32>
    %348 = vector.extract_strided_slice %346 {offsets = [0, 0], sizes = [8, 1], strides = [1, 1]} : vector<8x3xf32> to vector<8x1xf32>
    %349 = vector.extract_strided_slice %347 {offsets = [0, 0], sizes = [1, 16], strides = [1, 1]} : vector<3x16xf32> to vector<1x16xf32>
    %350 = vector.broadcast %348 : vector<8x1xf32> to vector<8x16xf32>
    %351 = vector.broadcast %349 : vector<1x16xf32> to vector<8x16xf32>
    %352 = arith.mulf %350, %351 : vector<8x16xf32>
    %353 = vector.extract_strided_slice %346 {offsets = [0, 1], sizes = [8, 1], strides = [1, 1]} : vector<8x3xf32> to vector<8x1xf32>
    %354 = vector.extract_strided_slice %347 {offsets = [1, 0], sizes = [1, 16], strides = [1, 1]} : vector<3x16xf32> to vector<1x16xf32>
    %355 = vector.broadcast %353 : vector<8x1xf32> to vector<8x16xf32>
    %356 = vector.broadcast %354 : vector<1x16xf32> to vector<8x16xf32>
    %357 = arith.mulf %355, %356 : vector<8x16xf32>
    %358 = arith.addf %352, %357 : vector<8x16xf32>
    %359 = vector.extract_strided_slice %346 {offsets = [0, 2], sizes = [8, 1], strides = [1, 1]} : vector<8x3xf32> to vector<8x1xf32>
    %360 = vector.extract_strided_slice %347 {offsets = [2, 0], sizes = [1, 16], strides = [1, 1]} : vector<3x16xf32> to vector<1x16xf32>
    %361 = vector.broadcast %359 : vector<8x1xf32> to vector<8x16xf32>
    %362 = vector.broadcast %360 : vector<1x16xf32> to vector<8x16xf32>
    %363 = arith.mulf %361, %362 : vector<8x16xf32>
    %364 = arith.addf %358, %363 : vector<8x16xf32>
    %cst_129 = arith.constant 1.000000e+00 : f32
    %365 = vector.broadcast %cst_129 : f32 to vector<8x16xf32>
    %366 = arith.addf %364, %365 : vector<8x16xf32>
    %c0_130 = arith.constant 0 : index
    %c0_131 = arith.constant 0 : index
    %367 = vector.load %arg22[%c0_130, %c0_131] : memref<3x16xf32, #tpu.memory_space<vmem>>, vector<3x16xf32>
    %368 = vector.extract_strided_slice %346 {offsets = [0, 0], sizes = [8, 1], strides = [1, 1]} : vector<8x3xf32> to vector<8x1xf32>
    %369 = vector.extract_strided_slice %367 {offsets = [0, 0], sizes = [1, 16], strides = [1, 1]} : vector<3x16xf32> to vector<1x16xf32>
    %370 = vector.broadcast %368 : vector<8x1xf32> to vector<8x16xf32>
    %371 = vector.broadcast %369 : vector<1x16xf32> to vector<8x16xf32>
    %372 = arith.mulf %370, %371 : vector<8x16xf32>
    %373 = vector.extract_strided_slice %346 {offsets = [0, 1], sizes = [8, 1], strides = [1, 1]} : vector<8x3xf32> to vector<8x1xf32>
    %374 = vector.extract_strided_slice %367 {offsets = [1, 0], sizes = [1, 16], strides = [1, 1]} : vector<3x16xf32> to vector<1x16xf32>
    %375 = vector.broadcast %373 : vector<8x1xf32> to vector<8x16xf32>
    %376 = vector.broadcast %374 : vector<1x16xf32> to vector<8x16xf32>
    %377 = arith.mulf %375, %376 : vector<8x16xf32>
    %378 = arith.addf %372, %377 : vector<8x16xf32>
    %379 = vector.extract_strided_slice %346 {offsets = [0, 2], sizes = [8, 1], strides = [1, 1]} : vector<8x3xf32> to vector<8x1xf32>
    %380 = vector.extract_strided_slice %367 {offsets = [2, 0], sizes = [1, 16], strides = [1, 1]} : vector<3x16xf32> to vector<1x16xf32>
    %381 = vector.broadcast %379 : vector<8x1xf32> to vector<8x16xf32>
    %382 = vector.broadcast %380 : vector<1x16xf32> to vector<8x16xf32>
    %383 = arith.mulf %381, %382 : vector<8x16xf32>
    %384 = arith.addf %378, %383 : vector<8x16xf32>
    %385 = vector.extract_strided_slice %345 {offsets = [0, 0], sizes = [8, 16], strides = [1, 1]} : vector<24x16xf32> to vector<8x16xf32>
    %386 = arith.mulf %385, %366 : vector<8x16xf32>
    %387 = arith.addf %386, %384 : vector<8x16xf32>
    %cst_132 = arith.constant 0.000000e+00 : f32
    %388 = vector.broadcast %cst_132 : f32 to vector<8x16xf32>
    %389 = arith.maximumf %387, %388 : vector<8x16xf32>
    %390 = math.absf %387 : vector<8x16xf32>
    %cst_133 = arith.constant 0.000000e+00 : f32
    %391 = vector.broadcast %cst_133 : f32 to vector<8x16xf32>
    %392 = arith.subf %391, %390 : vector<8x16xf32>
    %393 = math.exp %392 : vector<8x16xf32>
    %cst_134 = arith.constant 1.000000e+00 : f32
    %394 = vector.broadcast %cst_134 : f32 to vector<8x16xf32>
    %395 = arith.addf %394, %393 : vector<8x16xf32>
    %396 = math.log %395 : vector<8x16xf32>
    %397 = arith.addf %389, %396 : vector<8x16xf32>
    %398 = vector.extract_strided_slice %345 {offsets = [16, 0], sizes = [8, 16], strides = [1, 1]} : vector<24x16xf32> to vector<8x16xf32>
    %399 = arith.mulf %398, %366 : vector<8x16xf32>
    %400 = arith.addf %399, %384 : vector<8x16xf32>
    %401 = arith.addf %387, %400 : vector<8x16xf32>
    %cst_135 = arith.constant 0.000000e+00 : f32
    %402 = vector.broadcast %cst_135 : f32 to vector<8x16xf32>
    %403 = arith.maximumf %400, %402 : vector<8x16xf32>
    %404 = math.absf %400 : vector<8x16xf32>
    %cst_136 = arith.constant 0.000000e+00 : f32
    %405 = vector.broadcast %cst_136 : f32 to vector<8x16xf32>
    %406 = arith.subf %405, %404 : vector<8x16xf32>
    %407 = math.exp %406 : vector<8x16xf32>
    %cst_137 = arith.constant 1.000000e+00 : f32
    %408 = vector.broadcast %cst_137 : f32 to vector<8x16xf32>
    %409 = arith.addf %408, %407 : vector<8x16xf32>
    %410 = math.log %409 : vector<8x16xf32>
    %411 = arith.addf %403, %410 : vector<8x16xf32>
    %412 = arith.addf %397, %411 : vector<8x16xf32>
    %413 = arith.mulf %91, %412 : vector<8x16xf32>
    %414 = arith.mulf %85, %401 : vector<8x16xf32>
    %415 = arith.subf %413, %414 : vector<8x16xf32>
    %416 = vector.shape_cast %415 : vector<8x16xf32> to vector<1x8x16xf32>
    %cst_138 = arith.constant dense<0.000000e+00> : vector<1xf32>
    %417 = vector.multi_reduction <add>, %416, %cst_138 [1, 2] : vector<1x8x16xf32> to vector<1xf32>
    %418 = vector.shape_cast %417 : vector<1xf32> to vector<1x1x1xf32>
    %419 = vector.extract %418[0, 0, 0] : f32 from vector<1x1x1xf32>
    %420 = arith.addf %343, %419 : f32
    %421 = vector.shape_cast %260 : vector<8x8xf32> to vector<1x8x8xf32>
    %cst_139 = arith.constant dense<0.000000e+00> : vector<1xf32>
    %422 = vector.multi_reduction <add>, %421, %cst_139 [1, 2] : vector<1x8x8xf32> to vector<1xf32>
    %423 = vector.shape_cast %422 : vector<1xf32> to vector<1x1x1xf32>
    %424 = vector.extract %423[0, 0, 0] : f32 from vector<1x1x1xf32>
    %cst_140 = arith.constant 5.000000e-01 : f32
    %425 = arith.mulf %cst_140, %424 : f32
    %c0_141 = arith.constant 0 : index
    %426 = memref.load %arg35[%c0_141] : memref<1xf32, #tpu.memory_space<smem>>
    memref.store %425, %arg35[%c0_141] : memref<1xf32, #tpu.memory_space<smem>>
    %c0_142 = arith.constant 0 : index
    %427 = memref.load %arg36[%c0_142] : memref<1xf32, #tpu.memory_space<smem>>
    memref.store %420, %arg36[%c0_142] : memref<1xf32, #tpu.memory_space<smem>>
    return
  }
}

</mosaic_0001>

<llo_original>
// kernel: tpu_custom_call.1
$region0: #{tpu_custom_call.1}
  #allocation0 [shape = 'u32[]', space=smem, size = 0x4, offset = 0x4, fixed_abs, tag = 'smem constant byte address 0x4 - core index']
  #allocation1 [shape = 'u32[72,128]{1,0:T(1,128)}', space=vmem, size = 0x9000, scoped, tag = 'internal scratch']
  #allocation2 [shape = 'f32[24,8]{1,0:T(8,128)}', space=vmem, size = 0x3000, scoped, tag = 'scratch operand']
  %s0 = inlined_call_operand.smem [shape: u32[37], index: -1, kind: input, shape index: {}]
  %s1 = sld [smem:[%s0]]
  %s2 = scalar_lea.smem %s0, 1
  %s3 = sld [smem:[%s2]]
  %s4 = scalar_lea.smem %s0, 2
  %s5 = sld [smem:[%s4]]
  %s6 = scalar_lea.smem %s0, 3
  %s7 = sld [smem:[%s6]]
  %s8 = scalar_lea.smem %s0, 4
  %s9 = sld [smem:[%s8]]
  %s10 = scalar_lea.smem %s0, 5
  %s11 = sld [smem:[%s10]]
  %s12 = scalar_lea.smem %s0, 6
  %s13 = sld [smem:[%s12]]
  %s14 = scalar_lea.smem %s0, 7
  %s15 = sld [smem:[%s14]]
  %s16 = scalar_lea.smem %s0, 8
  %s17 = sld [smem:[%s16]]
  %s18 = scalar_lea.smem %s0, 9
  %s19 = sld [smem:[%s18]]
  %s20 = scalar_lea.smem %s0, 10
  %s21 = sld [smem:[%s20]]
  %s22 = scalar_lea.smem %s0, 11
  %s23 = sld [smem:[%s22]]
  %s24 = scalar_lea.smem %s0, 12
  %s25 = sld [smem:[%s24]]
  %s26 = scalar_lea.smem %s0, 13
  %s27 = sld [smem:[%s26]]
  %s28 = scalar_lea.smem %s0, 14
  %s29 = sld [smem:[%s28]]
  %s30 = scalar_lea.smem %s0, 15
  %s31 = sld [smem:[%s30]]
  %s32 = scalar_lea.smem %s0, 16
  %s33 = sld [smem:[%s32]]
  %s34 = scalar_lea.smem %s0, 17
  %s35 = sld [smem:[%s34]]
  %s36 = scalar_lea.smem %s0, 18
  %s37 = sld [smem:[%s36]]
  %s38 = scalar_lea.smem %s0, 19
  %s39 = sld [smem:[%s38]]
  %s40 = scalar_lea.smem %s0, 20
  %s41 = sld [smem:[%s40]]
  %s42 = scalar_lea.smem %s0, 21
  %s43 = sld [smem:[%s42]]
  %s44 = scalar_lea.smem %s0, 22
  %s45 = sld [smem:[%s44]]
  %s46 = scalar_lea.smem %s0, 23
  %s47 = sld [smem:[%s46]]
  %s48 = scalar_lea.smem %s0, 24
  %s49 = sld [smem:[%s48]]
  %s50 = scalar_lea.smem %s0, 25
  %s51 = sld [smem:[%s50]]
  %s52 = scalar_lea.smem %s0, 26
  %s53 = sld [smem:[%s52]]
  %s54 = scalar_lea.smem %s0, 27
  %s55 = sld [smem:[%s54]]
  %s56 = scalar_lea.smem %s0, 28
  %s57 = sld [smem:[%s56]]
  %s58 = scalar_lea.smem %s0, 29
  %s59 = sld [smem:[%s58]]
  %s60 = scalar_lea.smem %s0, 30
  %s61 = sld [smem:[%s60]]
  %s62 = scalar_lea.smem %s0, 31
  %s63 = sld [smem:[%s62]]
  %s64 = scalar_lea.smem %s0, 32
  %s65 = sld [smem:[%s64]]
  %s66 = scalar_lea.smem %s0, 33
  %s67 = sld [smem:[%s66]]
  %s68 = scalar_lea.smem %s0, 34
  %s69 = sld [smem:[%s68]]
  %s70 = scalar_lea.smem %s0, 35
  %s71 = sld [smem:[%s70]]
  %s72 = scalar_lea.smem %s0, 36
  %s73 = sld [smem:[%s72]]
  %74 = xla_tuple %s71, %s73
  %s75 = sld [smem:[#allocation0]]
  $region210: #{tpu_custom_call.1} parent=0
    _
  %s77 = ssub.s32 1, %s75
  %s78 = scalar_select 0, %s77, %s75
  $region1: #{tpu_custom_call.1} parent=0
    #allocation3 [shape = 'u8[512]{0}', space=vmem, size = 0x400, scoped, tag = 'input window, operand 0, single buffered']
    #allocation4 [shape = 's32[1]{0}', space=sflag, size = 0x4, scoped, tag = 'scoped memory for tpu_custom_call.1']
    #allocation5 [shape = 's32[1]{0}', space=sflag, size = 0x4, scoped, tag = 'scoped memory for tpu_custom_call.1']
    #allocation6 [shape = 'u8[512]{0}', space=vmem, size = 0x400, scoped, tag = 'input window, operand 1, single buffered']
    #allocation7 [shape = 's32[1]{0}', space=sflag, size = 0x4, scoped, tag = 'scoped memory for tpu_custom_call.1']
    #allocation8 [shape = 'u8[4096]{0}', space=vmem, size = 0x1000, scoped, tag = 'input window, operand 5, single buffered']
    #allocation9 [shape = 'u8[1024]{0}', space=vmem, size = 0x400, scoped, tag = 'input window, operand 7, single buffered']
    #allocation10 [shape = 's32[1]{0}', space=sflag, size = 0x4, scoped, tag = 'scoped memory for tpu_custom_call.1']
    #allocation11 [shape = 'u8[512]{0}', space=vmem, size = 0x400, scoped, tag = 'input window, operand 10, single buffered']
    #allocation12 [shape = 'u8[512]{0}', space=vmem, size = 0x400, scoped, tag = 'input window, operand 11, single buffered']
    #allocation13 [shape = 's32[1]{0}', space=sflag, size = 0x4, scoped, tag = 'scoped memory for tpu_custom_call.1']
    #allocation14 [shape = 'u8[512]{0}', space=vmem, size = 0x400, scoped, tag = 'input window, operand 13, single buffered']
    #allocation15 [shape = 'u8[512]{0}', space=vmem, size = 0x400, scoped, tag = 'input window, operand 14, single buffered']
    #allocation16 [shape = 's32[1]{0}', space=sflag, size = 0x4, scoped, tag = 'scoped memory for tpu_custom_call.1']
    #allocation17 [shape = 'u8[512]{0}', space=vmem, size = 0x400, scoped, tag = 'input window, operand 15, single buffered']
    #allocation18 [shape = 'u8[512]{0}', space=vmem, size = 0x400, scoped, tag = 'input window, operand 17, single buffered']
    #allocation19 [shape = 's32[1]{0}', space=sflag, size = 0x4, scoped, tag = 'scoped memory for tpu_custom_call.1']
    #allocation20 [shape = 'u8[4096]{0}', space=vmem, size = 0x1000, scoped, tag = 'input window, operand 19, single buffered']
    #allocation21 [shape = 'u8[2048]{0}', space=vmem, size = 0x800, scoped, tag = 'input window, operand 22, single buffered']
    #allocation22 [shape = 's32[1]{0}', space=sflag, size = 0x4, scoped, tag = 'scoped memory for tpu_custom_call.1']
    #allocation23 [shape = 'u8[2048]{0}', space=vmem, size = 0x800, scoped, tag = 'input window, operand 23, single buffered']
    #allocation24 [shape = 'u8[512]{0}', space=smem, size = 0x200, scoped, tag = 'output window, operand 0, single buffered']
    #allocation25 [shape = 'u8[512]{0}', space=smem, size = 0x200, scoped, tag = 'output window, operand 1, single buffered']
    #allocation26 [shape = 's32[1]{0}', space=sflag, size = 0x4, scoped, tag = 'scoped memory for tpu_custom_call.1']
    %79 = vsyncpa [#allocation4], 0
    %80 = vsyncpa [#allocation7], 0
    %81 = vsyncpa [#allocation10], 0
    %82 = vsyncpa [#allocation13], 0
    %83 = vsyncpa [#allocation16], 0
    %84 = vsyncpa [#allocation19], 0
    %85 = vsyncpa [#allocation22], 0
    %86 = vsyncpa [#allocation5], 0
    %87 = vsyncpa [#allocation26], 0
    // Predicated region
    $region2: #{tpu_custom_call.1} parent=1 // pred_check
      _
    $region3: #{tpu_custom_call.1} parent=1 // pred_check_branch
      %89 = sbr.rel (0) target = $region5
    $region4: #{tpu_custom_call.1} parent=1 // pred_region
      %91 = vsyncadd [#allocation4], 0
      %s93 = sshll.u32 %s1, 4
      %s94 = int_to_ptr.hbm [resolvable:$true] %s93
      %s95 = sshll.u32 [#allocation3], 4
      %s96 = int_to_ptr.vmem [resolvable:$true] %s95
      %98 = dma.hbm_to_vmem [thread:$0]  %s94, 16, %s96, [#allocation4]
    $region5: #{tpu_custom_call.1} parent=1 // pred_fallthru
      _
    // Predicated region
    $region6: #{tpu_custom_call.1} parent=1 // pred_check
      _
    $region7: #{tpu_custom_call.1} parent=1 // pred_check_branch
      %100 = sbr.rel (0) target = $region9
    $region8: #{tpu_custom_call.1} parent=1 // pred_region
      %102 = vsyncadd [#allocation7], 0
      %s104 = sshll.u32 %s3, 4
      %s105 = int_to_ptr.hbm [resolvable:$true] %s104
      %s106 = sshll.u32 [#allocation6], 4
      %s107 = int_to_ptr.vmem [resolvable:$true] %s106
      %109 = dma.hbm_to_vmem [thread:$0]  %s105, 16, %s107, [#allocation7]
    $region9: #{tpu_custom_call.1} parent=1 // pred_fallthru
      _
    // Predicated region
    $region10: #{tpu_custom_call.1} parent=1 // pred_check
      _
    $region11: #{tpu_custom_call.1} parent=1 // pred_check_branch
      %111 = sbr.rel (0) target = $region13
    $region12: #{tpu_custom_call.1} parent=1 // pred_region
      _
    $region13: #{tpu_custom_call.1} parent=1 // pred_fallthru
      _
    // Predicated region
    $region14: #{tpu_custom_call.1} parent=1 // pred_check
      _
    $region15: #{tpu_custom_call.1} parent=1 // pred_check_branch
      %113 = sbr.rel (0) target = $region17
    $region16: #{tpu_custom_call.1} parent=1 // pred_region
      _
    $region17: #{tpu_custom_call.1} parent=1 // pred_fallthru
      _
    // Predicated region
    $region18: #{tpu_custom_call.1} parent=1 // pred_check
      _
    $region19: #{tpu_custom_call.1} parent=1 // pred_check_branch
      %115 = sbr.rel (0) target = $region21
    $region20: #{tpu_custom_call.1} parent=1 // pred_region
      _
    $region21: #{tpu_custom_call.1} parent=1 // pred_fallthru
      _
    // Predicated region
    $region22: #{tpu_custom_call.1} parent=1 // pred_check
      _
    $region23: #{tpu_custom_call.1} parent=1 // pred_check_branch
      %117 = sbr.rel (0) target = $region25
    $region24: #{tpu_custom_call.1} parent=1 // pred_region
      %119 = vsyncadd [#allocation7], 0
      %s121 = sshll.u32 %s11, 4
      %s122 = int_to_ptr.hbm [resolvable:$true] %s121
      %s123 = sshll.u32 [#allocation8], 4
      %s124 = int_to_ptr.vmem [resolvable:$true] %s123
      %126 = dma.hbm_to_vmem [thread:$0]  %s122, 128, %s124, [#allocation7]
    $region25: #{tpu_custom_call.1} parent=1 // pred_fallthru
      _
    // Predicated region
    $region26: #{tpu_custom_call.1} parent=1 // pred_check
      _
    $region27: #{tpu_custom_call.1} parent=1 // pred_check_branch
      %128 = sbr.rel (0) target = $region29
    $region28: #{tpu_custom_call.1} parent=1 // pred_region
      _
    $region29: #{tpu_custom_call.1} parent=1 // pred_fallthru
      _
    // Predicated region
    $region30: #{tpu_custom_call.1} parent=1 // pred_check
      _
    $region31: #{tpu_custom_call.1} parent=1 // pred_check_branch
      %130 = sbr.rel (0) target = $region33
    $region32: #{tpu_custom_call.1} parent=1 // pred_region
      %132 = vsyncadd [#allocation10], 0
      %s134 = sshll.u32 %s15, 4
      %s135 = int_to_ptr.hbm [resolvable:$true] %s134
      %s136 = sshll.u32 [#allocation9], 4
      %s137 = int_to_ptr.vmem [resolvable:$true] %s136
      %139 = dma.hbm_to_vmem [thread:$0]  %s135, 32, %s137, [#allocation10]
    $region33: #{tpu_custom_call.1} parent=1 // pred_fallthru
      _
    // Predicated region
    $region34: #{tpu_custom_call.1} parent=1 // pred_check
      _
    $region35: #{tpu_custom_call.1} parent=1 // pred_check_branch
      %141 = sbr.rel (0) target = $region37
    $region36: #{tpu_custom_call.1} parent=1 // pred_region
      _
    $region37: #{tpu_custom_call.1} parent=1 // pred_fallthru
      _
    // Predicated region
    $region38: #{tpu_custom_call.1} parent=1 // pred_check
      _
    $region39: #{tpu_custom_call.1} parent=1 // pred_check_branch
      %143 = sbr.rel (0) target = $region41
    $region40: #{tpu_custom_call.1} parent=1 // pred_region
      _
    $region41: #{tpu_custom_call.1} parent=1 // pred_fallthru
      _
    // Predicated region
    $region42: #{tpu_custom_call.1} parent=1 // pred_check
      _
    $region43: #{tpu_custom_call.1} parent=1 // pred_check_branch
      %145 = sbr.rel (0) target = $region45
    $region44: #{tpu_custom_call.1} parent=1 // pred_region
      %147 = vsyncadd [#allocation10], 0
      %s149 = sshll.u32 %s21, 4
      %s150 = int_to_ptr.hbm [resolvable:$true] %s149
      %s151 = sshll.u32 [#allocation11], 4
      %s152 = int_to_ptr.vmem [resolvable:$true] %s151
      %154 = dma.hbm_to_vmem [thread:$0]  %s150, 16, %s152, [#allocation10]
    $region45: #{tpu_custom_call.1} parent=1 // pred_fallthru
      _
    // Predicated region
    $region46: #{tpu_custom_call.1} parent=1 // pred_check
      _
    $region47: #{tpu_custom_call.1} parent=1 // pred_check_branch
      %156 = sbr.rel (0) target = $region49
    $region48: #{tpu_custom_call.1} parent=1 // pred_region
      %158 = vsyncadd [#allocation13], 0
      %s160 = sshll.u32 %s23, 4
      %s161 = int_to_ptr.hbm [resolvable:$true] %s160
      %s162 = sshll.u32 [#allocation12], 4
      %s163 = int_to_ptr.vmem [resolvable:$true] %s162
      %165 = dma.hbm_to_vmem [thread:$0]  %s161, 16, %s163, [#allocation13]
    $region49: #{tpu_custom_call.1} parent=1 // pred_fallthru
      _
    // Predicated region
    $region50: #{tpu_custom_call.1} parent=1 // pred_check
      _
    $region51: #{tpu_custom_call.1} parent=1 // pred_check_branch
      %167 = sbr.rel (0) target = $region53
    $region52: #{tpu_custom_call.1} parent=1 // pred_region
      _
    $region53: #{tpu_custom_call.1} parent=1 // pred_fallthru
      _
    // Predicated region
    $region54: #{tpu_custom_call.1} parent=1 // pred_check
      _
    $region55: #{tpu_custom_call.1} parent=1 // pred_check_branch
      %169 = sbr.rel (0) target = $region57
    $region56: #{tpu_custom_call.1} parent=1 // pred_region
      %171 = vsyncadd [#allocation13], 0
      %s173 = sshll.u32 %s27, 4
      %s174 = int_to_ptr.hbm [resolvable:$true] %s173
      %s175 = sshll.u32 [#allocation14], 4
      %s176 = int_to_ptr.vmem [resolvable:$true] %s175
      %178 = dma.hbm_to_vmem [thread:$0]  %s174, 16, %s176, [#allocation13]
    $region57: #{tpu_custom_call.1} parent=1 // pred_fallthru
      _
    // Predicated region
    $region58: #{tpu_custom_call.1} parent=1 // pred_check
      _
    $region59: #{tpu_custom_call.1} parent=1 // pred_check_branch
      %180 = sbr.rel (0) target = $region61
    $region60: #{tpu_custom_call.1} parent=1 // pred_region
      %182 = vsyncadd [#allocation16], 0
      %s184 = sshll.u32 %s29, 4
      %s185 = int_to_ptr.hbm [resolvable:$true] %s184
      %s186 = sshll.u32 [#allocation15], 4
      %s187 = int_to_ptr.vmem [resolvable:$true] %s186
      %189 = dma.hbm_to_vmem [thread:$0]  %s185, 16, %s187, [#allocation16]
    $region61: #{tpu_custom_call.1} parent=1 // pred_fallthru
      _
    // Predicated region
    $region62: #{tpu_custom_call.1} parent=1 // pred_check
      _
    $region63: #{tpu_custom_call.1} parent=1 // pred_check_branch
      %191 = sbr.rel (0) target = $region65
    $region64: #{tpu_custom_call.1} parent=1 // pred_region
      %193 = vsyncadd [#allocation16], 0
      %s195 = sshll.u32 %s31, 4
      %s196 = int_to_ptr.hbm [resolvable:$true] %s195
      %s197 = sshll.u32 [#allocation17], 4
      %s198 = int_to_ptr.vmem [resolvable:$true] %s197
      %200 = dma.hbm_to_vmem [thread:$0]  %s196, 16, %s198, [#allocation16]
    $region65: #{tpu_custom_call.1} parent=1 // pred_fallthru
      _
    // Predicated region
    $region66: #{tpu_custom_call.1} parent=1 // pred_check
      _
    $region67: #{tpu_custom_call.1} parent=1 // pred_check_branch
      %202 = sbr.rel (0) target = $region69
    $region68: #{tpu_custom_call.1} parent=1 // pred_region
      _
    $region69: #{tpu_custom_call.1} parent=1 // pred_fallthru
      _
    // Predicated region
    $region70: #{tpu_custom_call.1} parent=1 // pred_check
      _
    $region71: #{tpu_custom_call.1} parent=1 // pred_check_branch
      %204 = sbr.rel (0) target = $region73
    $region72: #{tpu_custom_call.1} parent=1 // pred_region
      %206 = vsyncadd [#allocation19], 0
      %s208 = sshll.u32 %s35, 4
      %s209 = int_to_ptr.hbm [resolvable:$true] %s208
      %s210 = sshll.u32 [#allocation18], 4
      %s211 = int_to_ptr.vmem [resolvable:$true] %s210
      %213 = dma.hbm_to_vmem [thread:$0]  %s209, 16, %s211, [#allocation19]
    $region73: #{tpu_custom_call.1} parent=1 // pred_fallthru
      _
    // Predicated region
    $region74: #{tpu_custom_call.1} parent=1 // pred_check
      _
    $region75: #{tpu_custom_call.1} parent=1 // pred_check_branch
      %215 = sbr.rel (0) target = $region77
    $region76: #{tpu_custom_call.1} parent=1 // pred_region
      _
    $region77: #{tpu_custom_call.1} parent=1 // pred_fallthru
      _
    // Predicated region
    $region78: #{tpu_custom_call.1} parent=1 // pred_check
      _
    $region79: #{tpu_custom_call.1} parent=1 // pred_check_branch
      %217 = sbr.rel (0) target = $region81
    $region80: #{tpu_custom_call.1} parent=1 // pred_region
      %219 = vsyncadd [#allocation19], 0
      %s221 = sshll.u32 %s39, 4
      %s222 = int_to_ptr.hbm [resolvable:$true] %s221
      %s223 = sshll.u32 [#allocation20], 4
      %s224 = int_to_ptr.vmem [resolvable:$true] %s223
      %226 = dma.hbm_to_vmem [thread:$0]  %s222, 128, %s224, [#allocation19]
    $region81: #{tpu_custom_call.1} parent=1 // pred_fallthru
      _
    // Predicated region
    $region82: #{tpu_custom_call.1} parent=1 // pred_check
      _
    $region83: #{tpu_custom_call.1} parent=1 // pred_check_branch
      %228 = sbr.rel (0) target = $region85
    $region84: #{tpu_custom_call.1} parent=1 // pred_region
      _
    $region85: #{tpu_custom_call.1} parent=1 // pred_fallthru
      _
    // Predicated region
    $region86: #{tpu_custom_call.1} parent=1 // pred_check
      _
    $region87: #{tpu_custom_call.1} parent=1 // pred_check_branch
      %230 = sbr.rel (0) target = $region89
    $region88: #{tpu_custom_call.1} parent=1 // pred_region
      _
    $region89: #{tpu_custom_call.1} parent=1 // pred_fallthru
      _
    // Predicated region
    $region90: #{tpu_custom_call.1} parent=1 // pred_check
      _
    $region91: #{tpu_custom_call.1} parent=1 // pred_check_branch
      %232 = sbr.rel (0) target = $region93
    $region92: #{tpu_custom_call.1} parent=1 // pred_region
      %234 = vsyncadd [#allocation22], 0
      %s236 = sshll.u32 %s45, 4
      %s237 = int_to_ptr.hbm [resolvable:$true] %s236
      %s238 = sshll.u32 [#allocation21], 4
      %s239 = int_to_ptr.vmem [resolvable:$true] %s238
      %241 = dma.hbm_to_vmem [thread:$0]  %s237, 64, %s239, [#allocation22]
    $region93: #{tpu_custom_call.1} parent=1 // pred_fallthru
      _
    // Predicated region
    $region94: #{tpu_custom_call.1} parent=1 // pred_check
      _
    $region95: #{tpu_custom_call.1} parent=1 // pred_check_branch
      %243 = sbr.rel (0) target = $region97
    $region96: #{tpu_custom_call.1} parent=1 // pred_region
      %245 = vsyncadd [#allocation22], 0
      %s247 = sshll.u32 %s47, 4
      %s248 = int_to_ptr.hbm [resolvable:$true] %s247
      %s249 = sshll.u32 [#allocation23], 4
      %s250 = int_to_ptr.vmem [resolvable:$true] %s249
      %252 = dma.hbm_to_vmem [thread:$0]  %s248, 64, %s250, [#allocation22]
    $region97: #{tpu_custom_call.1} parent=1 // pred_fallthru
      _
    // Predicated region
    $region98: #{tpu_custom_call.1} parent=1 // pred_check
      _
    $region99: #{tpu_custom_call.1} parent=1 // pred_check_branch
      %254 = sbr.rel (0) target = $region101
    $region100: #{tpu_custom_call.1} parent=1 // pred_region
      _
    $region101: #{tpu_custom_call.1} parent=1 // pred_fallthru
      _
    // Predicated region
    $region102: #{tpu_custom_call.1} parent=1 // pred_check
      _
    $region103: #{tpu_custom_call.1} parent=1 // pred_check_branch
      %256 = sbr.rel (0) target = $region105
    $region104: #{tpu_custom_call.1} parent=1 // pred_region
      _
    $region105: #{tpu_custom_call.1} parent=1 // pred_fallthru
      _
    // Predicated region
    $region106: #{tpu_custom_call.1} parent=1 // pred_check
      _
    $region107: #{tpu_custom_call.1} parent=1 // pred_check_branch
      %258 = sbr.rel (0) target = $region109
    $region108: #{tpu_custom_call.1} parent=1 // pred_region
      _
    $region109: #{tpu_custom_call.1} parent=1 // pred_fallthru
      _
    // Predicated region
    $region110: #{tpu_custom_call.1} parent=1 // pred_check
      _
    $region111: #{tpu_custom_call.1} parent=1 // pred_check_branch
      %260 = sbr.rel (0) target = $region113
    $region112: #{tpu_custom_call.1} parent=1 // pred_region
      _
    $region113: #{tpu_custom_call.1} parent=1 // pred_fallthru
      _
    // Predicated region
    $region114: #{tpu_custom_call.1} parent=1 // pred_check
      _
    $region115: #{tpu_custom_call.1} parent=1 // pred_check_branch
      %262 = sbr.rel (0) target = $region117
    $region116: #{tpu_custom_call.1} parent=1 // pred_region
      _
    $region117: #{tpu_custom_call.1} parent=1 // pred_fallthru
      _
    // Predicated region
    $region118: #{tpu_custom_call.1} parent=1 // pred_check
      _
    $region119: #{tpu_custom_call.1} parent=1 // pred_check_branch
      %264 = sbr.rel (0) target = $region121
    $region120: #{tpu_custom_call.1} parent=1 // pred_region
      _
    $region121: #{tpu_custom_call.1} parent=1 // pred_fallthru
      _
    // Predicated region
    $region122: #{tpu_custom_call.1} parent=1 // pred_check
      _
    $region123: #{tpu_custom_call.1} parent=1 // pred_check_branch
      %266 = sbr.rel (0) target = $region125
    $region124: #{tpu_custom_call.1} parent=1 // pred_region
      _
    $region125: #{tpu_custom_call.1} parent=1 // pred_fallthru
      _
    // Predicated region
    $region126: #{tpu_custom_call.1} parent=1 // pred_check
      _
    $region127: #{tpu_custom_call.1} parent=1 // pred_check_branch
      %268 = sbr.rel (0) target = $region129
    $region128: #{tpu_custom_call.1} parent=1 // pred_region
      _
    $region129: #{tpu_custom_call.1} parent=1 // pred_fallthru
      _
    // Predicated region
    $region130: #{tpu_custom_call.1} parent=1 // pred_check
      _
    $region131: #{tpu_custom_call.1} parent=1 // pred_check_branch
      %270 = sbr.rel (0) target = $region133
    $region132: #{tpu_custom_call.1} parent=1 // pred_region
      _
    $region133: #{tpu_custom_call.1} parent=1 // pred_fallthru
      _
    // Predicated region
    $region134: #{tpu_custom_call.1} parent=1 // pred_check
      _
    $region135: #{tpu_custom_call.1} parent=1 // pred_check_branch
      %272 = sbr.rel (0) target = $region137
    $region136: #{tpu_custom_call.1} parent=1 // pred_region
      _
    $region137: #{tpu_custom_call.1} parent=1 // pred_fallthru
      _
    // Predicated region
    $region138: #{tpu_custom_call.1} parent=1 // pred_check
      _
    $region139: #{tpu_custom_call.1} parent=1 // pred_check_branch
      %274 = sbr.rel (0) target = $region141
    $region140: #{tpu_custom_call.1} parent=1 // pred_region
      _
    $region141: #{tpu_custom_call.1} parent=1 // pred_fallthru
      _
    // Predicated region
    $region142: #{tpu_custom_call.1} parent=1 // pred_check
      _
    $region143: #{tpu_custom_call.1} parent=1 // pred_check_branch
      %276 = sbr.rel (0) target = $region145
    $region144: #{tpu_custom_call.1} parent=1 // pred_region
      %278 = dma.done [#allocation4], 16
    $region145: #{tpu_custom_call.1} parent=1 // pred_fallthru
      _
    // Predicated region
    $region146: #{tpu_custom_call.1} parent=1 // pred_check
      _
    $region147: #{tpu_custom_call.1} parent=1 // pred_check_branch
      %280 = sbr.rel (0) target = $region149
    $region148: #{tpu_custom_call.1} parent=1 // pred_region
      %282 = dma.done [#allocation7], 16
    $region149: #{tpu_custom_call.1} parent=1 // pred_fallthru
      _
    // Predicated region
    $region150: #{tpu_custom_call.1} parent=1 // pred_check
      _
    $region151: #{tpu_custom_call.1} parent=1 // pred_check_branch
      %284 = sbr.rel (0) target = $region153
    $region152: #{tpu_custom_call.1} parent=1 // pred_region
      %286 = dma.done [#allocation7], 128
    $region153: #{tpu_custom_call.1} parent=1 // pred_fallthru
      _
    // Predicated region
    $region154: #{tpu_custom_call.1} parent=1 // pred_check
      _
    $region155: #{tpu_custom_call.1} parent=1 // pred_check_branch
      %288 = sbr.rel (0) target = $region157
    $region156: #{tpu_custom_call.1} parent=1 // pred_region
      %290 = dma.done [#allocation10], 32
    $region157: #{tpu_custom_call.1} parent=1 // pred_fallthru
      _
    // Predicated region
    $region158: #{tpu_custom_call.1} parent=1 // pred_check
      _
    $region159: #{tpu_custom_call.1} parent=1 // pred_check_branch
      %292 = sbr.rel (0) target = $region161
    $region160: #{tpu_custom_call.1} parent=1 // pred_region
      %294 = dma.done [#allocation10], 16
    $region161: #{tpu_custom_call.1} parent=1 // pred_fallthru
      _
    // Predicated region
    $region162: #{tpu_custom_call.1} parent=1 // pred_check
      _
    $region163: #{tpu_custom_call.1} parent=1 // pred_check_branch
      %296 = sbr.rel (0) target = $region165
    $region164: #{tpu_custom_call.1} parent=1 // pred_region
      %298 = dma.done [#allocation13], 16
    $region165: #{tpu_custom_call.1} parent=1 // pred_fallthru
      _
    // Predicated region
    $region166: #{tpu_custom_call.1} parent=1 // pred_check
      _
    $region167: #{tpu_custom_call.1} parent=1 // pred_check_branch
      %300 = sbr.rel (0) target = $region169
    $region168: #{tpu_custom_call.1} parent=1 // pred_region
      %302 = dma.done [#allocation13], 16
    $region169: #{tpu_custom_call.1} parent=1 // pred_fallthru
      _
    // Predicated region
    $region170: #{tpu_custom_call.1} parent=1 // pred_check
      _
    $region171: #{tpu_custom_call.1} parent=1 // pred_check_branch
      %304 = sbr.rel (0) target = $region173
    $region172: #{tpu_custom_call.1} parent=1 // pred_region
      %306 = dma.done [#allocation16], 16
    $region173: #{tpu_custom_call.1} parent=1 // pred_fallthru
      _
    // Predicated region
    $region174: #{tpu_custom_call.1} parent=1 // pred_check
      _
    $region175: #{tpu_custom_call.1} parent=1 // pred_check_branch
      %308 = sbr.rel (0) target = $region177
    $region176: #{tpu_custom_call.1} parent=1 // pred_region
      %310 = dma.done [#allocation16], 16
    $region177: #{tpu_custom_call.1} parent=1 // pred_fallthru
      _
    // Predicated region
    $region178: #{tpu_custom_call.1} parent=1 // pred_check
      _
    $region179: #{tpu_custom_call.1} parent=1 // pred_check_branch
      %312 = sbr.rel (0) target = $region181
    $region180: #{tpu_custom_call.1} parent=1 // pred_region
      %314 = dma.done [#allocation19], 16
    $region181: #{tpu_custom_call.1} parent=1 // pred_fallthru
      _
    // Predicated region
    $region182: #{tpu_custom_call.1} parent=1 // pred_check
      _
    $region183: #{tpu_custom_call.1} parent=1 // pred_check_branch
      %316 = sbr.rel (0) target = $region185
    $region184: #{tpu_custom_call.1} parent=1 // pred_region
      %318 = dma.done [#allocation19], 128
    $region185: #{tpu_custom_call.1} parent=1 // pred_fallthru
      _
    // Predicated region
    $region186: #{tpu_custom_call.1} parent=1 // pred_check
      _
    $region187: #{tpu_custom_call.1} parent=1 // pred_check_branch
      %320 = sbr.rel (0) target = $region189
    $region188: #{tpu_custom_call.1} parent=1 // pred_region
      %322 = dma.done [#allocation22], 64
    $region189: #{tpu_custom_call.1} parent=1 // pred_fallthru
      _
    // Predicated region
    $region190: #{tpu_custom_call.1} parent=1 // pred_check
      _
    $region191: #{tpu_custom_call.1} parent=1 // pred_check_branch
      %324 = sbr.rel (0) target = $region193
    $region192: #{tpu_custom_call.1} parent=1 // pred_region
      %326 = dma.done [#allocation22], 64
    $region193: #{tpu_custom_call.1} parent=1 // pred_fallthru
      _
    %v327 = vld [vmem:[#allocation3] sm:$0x1]
    %v328 = vld [vmem:[#allocation6] sm:$0x1]
    %v329 = vld [vmem:[%s7] sm:$0xff]
    %v330 = vadd.f32 %v329, 1.0
    %v331 = vlog2.pop %v330
    %v332 = vmul.f32 %v331, 0.6931472
    %v333 = vld [vmem:[%s17] sm:$0xff]
    %v334 = vld [vmem:[%s17 + $0x8] sm:$0xff]
    %v335 = vld [vmem:[%s17 + $0x10] sm:$0xff]
    %v336 = vld [vmem:[%s17 + $0x18] sm:$0xff]
    %v337 = vld [vmem:[%s19] sm:$0x1]
    %v339 = vperm.slane %v337, 0
    %vm341 = vcmask 261120
    %v343 = vsel %vm341, %v332, 0
    %345 = vmatpush.msra.mxu0 0.0
    %346 = vmatpush.msra.mxu0 0.0
    %347 = vmatpush.msra.mxu0 0.0
    %348 = vmatpush.msra.mxu0 0.0
    %349 = vmatpush.msra.mxu0 0.0
    %350 = vmatpush.msra.mxu0 0.0
    %351 = vmatpush.msra.mxu0 0.0
    %352 = vmatpush.msra.mxu0 0.0
    %353 = vmatpush.msra.mxu0 0.0
    %354 = vmatpush.msra.mxu0 0.0
    %355 = vmatpush.msra.mxu0 0.0
    %356 = vmatpush.msra.mxu0 0.0
    %357 = vmatpush.msra.mxu0 %v336
    %358 = vmatpush.msra.mxu0 %v335
    %359 = vmatpush.msra.mxu0 %v334
    %360 = vmatpush.msra.mxu0 %v333
    %361 = vmatmul.f32.gmra.mxu0 %v343
    %v362 = vpop.f32.mrf.mxu0
    %v363 = vadd.f32 %v339, %v362
    %364 = vdwg.mxu0
    %v365 = vld [vmem:[#allocation11] sm:$0x1]
    %v366 = vld [vmem:[#allocation12] sm:$0x1]
    %v367 = vsel %vm341, %v363, 0.0
    %v368 = vrot.slane %v367, 4
    %v369 = vadd.f32 %v367, %v368
    %v370 = vrot.slane %v369, 2
    %v371 = vadd.f32 %v369, %v370
    %v372 = vrot.slane %v371, 1
    %v373 = vadd.f32 %v371, %v372
    %v374 = vrcp.pop 8.0
    %v375 = vmul.f32 8.0, %v374
    %v376 = vsub.f32 1.0, %v375
    %v377 = vmul.f32 %v374, %v376
    %v378 = vadd.f32 %v374, %v377
    %vm379 = vweird.f32 %v374
    %v380 = vsel %vm379, %v374, %v378
    %v381 = vmul.f32 %v373, %v380
    %v382 = vsub.f32 %v363, %v381
    %v383 = vmul.f32 %v382, %v382
    %v384 = vsel %vm341, %v383, 0.0
    %v385 = vrot.slane %v384, 4
    %v386 = vadd.f32 %v384, %v385
    %v387 = vrot.slane %v386, 2
    %v388 = vadd.f32 %v386, %v387
    %v389 = vrot.slane %v388, 1
    %v390 = vadd.f32 %v388, %v389
    %v391 = vmul.f32 %v390, %v380
    %v392 = vadd.f32 %v391, 1e-05
    %v393 = vrsqrt.pop %v392
    %v394 = vmul.f32 %v393, %v392
    %v395 = vmul.f32 %v394, %v393
    %v396 = vmul.f32 0.5, %v395
    %v397 = vsub.f32 1.5, %v396
    %v398 = vmul.f32 %v393, %v397
    %vm399 = vweird.f32 %v392
    %vm400 = vweird.f32 %v393
    %vm401 = vmor %vm399, %vm400
    %v402 = vsel %vm401, %v393, %v398
    %v403 = vmul.f32 %v382, %v402
    %v405 = vperm.slane %v365, 0
    %v407 = vmul.f32 %v403, %v405
    %v409 = vperm.slane %v366, 0
    %v411 = vadd.f32 %v407, %v409
    %v412 = vmul.f32 %v411, 0.01
    %v413 = vmax.f32 %v411, %v412
    %v414 = vld [vmem:[%s25] sm:$0xff]
    %v415 = vld [vmem:[%s25 + $0x8] sm:$0xff]
    %v416 = vld [vmem:[%s25 + $0x10] sm:$0xff]
    %v417 = vld [vmem:[%s25 + $0x18] sm:$0xff]
    %v418 = vld [vmem:[#allocation14] sm:$0x1]
    %v420 = vperm.slane %v418, 0
    %v423 = vsel %vm341, %v413, 0
    %425 = vmatpush.msra.mxu0 0.0
    %426 = vmatpush.msra.mxu0 0.0
    %427 = vmatpush.msra.mxu0 0.0
    %428 = vmatpush.msra.mxu0 0.0
    %429 = vmatpush.msra.mxu0 0.0
    %430 = vmatpush.msra.mxu0 0.0
    %431 = vmatpush.msra.mxu0 0.0
    %432 = vmatpush.msra.mxu0 0.0
    %433 = vmatpush.msra.mxu0 0.0
    %434 = vmatpush.msra.mxu0 0.0
    %435 = vmatpush.msra.mxu0 0.0
    %436 = vmatpush.msra.mxu0 0.0
    %437 = vmatpush.msra.mxu0 %v417
    %438 = vmatpush.msra.mxu0 %v416
    %439 = vmatpush.msra.mxu0 %v415
    %440 = vmatpush.msra.mxu0 %v414
    %441 = vmatmul.f32.gmra.mxu0 %v423
    %v442 = vpop.f32.mrf.mxu0
    %v443 = vadd.f32 %v420, %v442
    %444 = vdwg.mxu0
    %v445 = vld [vmem:[#allocation15] sm:$0x1]
    %v446 = vld [vmem:[#allocation17] sm:$0x1]
    %vm447 = vcmask 130048
    %v448 = vsel %vm447, %v443, 0.0
    %v449 = vrot.slane %v448, 4
    %v450 = vadd.f32 %v448, %v449
    %v451 = vrot.slane %v450, 2
    %v452 = vadd.f32 %v450, %v451
    %v453 = vrot.slane %v452, 1
    %v454 = vadd.f32 %v452, %v453
    %v455 = vmul.f32 %v454, %v380
    %v456 = vsub.f32 %v443, %v455
    %v457 = vmul.f32 %v456, %v456
    %v458 = vsel %vm447, %v457, 0.0
    %v459 = vrot.slane %v458, 4
    %v460 = vadd.f32 %v458, %v459
    %v461 = vrot.slane %v460, 2
    %v462 = vadd.f32 %v460, %v461
    %v463 = vrot.slane %v462, 1
    %v464 = vadd.f32 %v462, %v463
    %v465 = vmul.f32 %v464, %v380
    %v466 = vadd.f32 %v465, 1e-05
    %v467 = vrsqrt.pop %v466
    %v468 = vmul.f32 %v467, %v466
    %v469 = vmul.f32 %v468, %v467
    %v470 = vmul.f32 0.5, %v469
    %v471 = vsub.f32 1.5, %v470
    %v472 = vmul.f32 %v467, %v471
    %vm473 = vweird.f32 %v466
    %vm474 = vweird.f32 %v467
    %vm475 = vmor %vm473, %vm474
    %v476 = vsel %vm475, %v467, %v472
    %v477 = vmul.f32 %v456, %v476
    %v479 = vperm.slane %v445, 0
    %v481 = vmul.f32 %v477, %v479
    %v483 = vperm.slane %v446, 0
    %v485 = vadd.f32 %v481, %v483
    %v486 = vmul.f32 %v485, 0.01
    %v487 = vmax.f32 %v485, %v486
    %v488 = vld [vmem:[%s33] sm:$0xff]
    %v489 = vld [vmem:[%s33 + $0x8] sm:$0xff]
    %v490 = vld [vmem:[#allocation18] sm:$0x1]
    %v492 = vperm.slane %v490, 0
    %v495 = vsel %vm447, %v487, 0
    %497 = vmatpush.msra.mxu0 0.0
    %498 = vmatpush.msra.mxu0 0.0
    %499 = vmatpush.msra.mxu0 0.0
    %500 = vmatpush.msra.mxu0 0.0
    %501 = vmatpush.msra.mxu0 0.0
    %502 = vmatpush.msra.mxu0 0.0
    %503 = vmatpush.msra.mxu0 0.0
    %504 = vmatpush.msra.mxu0 0.0
    %505 = vmatpush.msra.mxu0 0.0
    %506 = vmatpush.msra.mxu0 0.0
    %507 = vmatpush.msra.mxu0 0.0
    %508 = vmatpush.msra.mxu0 0.0
    %509 = vmatpush.msra.mxu0 0.0
    %510 = vmatpush.msra.mxu0 0.0
    %511 = vmatpush.msra.mxu0 %v489
    %512 = vmatpush.msra.mxu0 %v488
    %513 = vmatmul.f32.gmra.mxu0 %v495
    %v514 = vpop.f32.mrf.mxu0
    %v515 = vadd.f32 %v492, %v514
    %516 = vdwg.mxu0
    %v517 = vsub.f32 0.0, %v515
    %v518 = vmul.f32 %v517, 1.442695
    %v519 = vpow.pop %v518
    %521 = vrot.lane.b32.xlu0 %v519, 120
    %v522 = vpop.permute.xlu0 %521
    %v524 = vmul.f32 %v515, %v522
    %v525 = vld [vmem:[%s37] sm:$0xff]
    %v526 = vadd.f32 %v525, 1.0
    %v527 = vlog2.pop %v526
    %v528 = vmul.f32 %v527, 0.6931472
    %v529 = vld [vmem:[%s49] sm:$0xff]
    %v530 = vld [vmem:[%s49 + $0x8] sm:$0xff]
    %v531 = vld [vmem:[#allocation20] sm:$0xff]
    %v532 = vadd.f32 %v531, 1.0
    %v533 = vlog2.pop %v532
    %v534 = vmul.f32 %v533, 0.6931472
    %v535 = vld [vmem:[%s51] sm:$0xff]
    %v536 = vld [vmem:[%s51 + $0x8] sm:$0xff]
    %v538 = vsel %vm447, %v534, 0
    %540 = vmatpush.msra.mxu0 0.0
    %541 = vmatpush.msra.mxu0 0.0
    %542 = vmatpush.msra.mxu0 0.0
    %543 = vmatpush.msra.mxu0 0.0
    %544 = vmatpush.msra.mxu0 0.0
    %545 = vmatpush.msra.mxu0 0.0
    %546 = vmatpush.msra.mxu0 0.0
    %547 = vmatpush.msra.mxu0 0.0
    %548 = vmatpush.msra.mxu0 0.0
    %549 = vmatpush.msra.mxu0 0.0
    %550 = vmatpush.msra.mxu0 0.0
    %551 = vmatpush.msra.mxu0 0.0
    %552 = vmatpush.msra.mxu0 0.0
    %553 = vmatpush.msra.mxu0 0.0
    %554 = vmatpush.msra.mxu0 %v536
    %555 = vmatpush.msra.mxu0 %v535
    %556 = vmatmul.f32.gmra.mxu0 %v538
    %v557 = vpop.f32.mrf.mxu0
    %v558 = vadd.f32 0.0, %v557
    %559 = vdwg.mxu0
    %v561 = vsel %vm447, %v528, 0
    %563 = vmatpush.msra.mxu0 0.0
    %564 = vmatpush.msra.mxu0 0.0
    %565 = vmatpush.msra.mxu0 0.0
    %566 = vmatpush.msra.mxu0 0.0
    %567 = vmatpush.msra.mxu0 0.0
    %568 = vmatpush.msra.mxu0 0.0
    %569 = vmatpush.msra.mxu0 0.0
    %570 = vmatpush.msra.mxu0 0.0
    %571 = vmatpush.msra.mxu0 0.0
    %572 = vmatpush.msra.mxu0 0.0
    %573 = vmatpush.msra.mxu0 0.0
    %574 = vmatpush.msra.mxu0 0.0
    %575 = vmatpush.msra.mxu0 0.0
    %576 = vmatpush.msra.mxu0 0.0
    %577 = vmatpush.msra.mxu0 %v530
    %578 = vmatpush.msra.mxu0 %v529
    %579 = vmatmul.f32.gmra.mxu0 %v561
    %v580 = vpop.f32.mrf.mxu0
    %v581 = vadd.f32 %v558, %v580
    %582 = vdwg.mxu0
    %v583 = vld [vmem:[%s53] sm:$0x1]
    %v585 = vperm.slane %v583, 0
    %v587 = vadd.f32 %v581, %v585
    %v588 = vld [vmem:[%s55] sm:$0x1]
    %v589 = vld [vmem:[%s57] sm:$0x1]
    %v590 = vsel %vm341, %v587, 0.0
    %v591 = vrot.slane %v590, 4
    %v592 = vadd.f32 %v590, %v591
    %v593 = vrot.slane %v592, 2
    %v594 = vadd.f32 %v592, %v593
    %v595 = vrot.slane %v594, 1
    %v596 = vadd.f32 %v594, %v595
    %v597 = vmul.f32 %v596, %v380
    %v598 = vsub.f32 %v587, %v597
    %v599 = vmul.f32 %v598, %v598
    %v600 = vsel %vm341, %v599, 0.0
    %v601 = vrot.slane %v600, 4
    %v602 = vadd.f32 %v600, %v601
    %v603 = vrot.slane %v602, 2
    %v604 = vadd.f32 %v602, %v603
    %v605 = vrot.slane %v604, 1
    %v606 = vadd.f32 %v604, %v605
    %v607 = vmul.f32 %v606, %v380
    %v608 = vadd.f32 %v607, 1e-05
    %v609 = vrsqrt.pop %v608
    %v610 = vmul.f32 %v609, %v608
    %v611 = vmul.f32 %v610, %v609
    %v612 = vmul.f32 0.5, %v611
    %v613 = vsub.f32 1.5, %v612
    %v614 = vmul.f32 %v609, %v613
    %vm615 = vweird.f32 %v608
    %vm616 = vweird.f32 %v609
    %vm617 = vmor %vm615, %vm616
    %v618 = vsel %vm617, %v609, %v614
    %v619 = vmul.f32 %v598, %v618
    %v621 = vperm.slane %v588, 0
    %v623 = vmul.f32 %v619, %v621
    %v625 = vperm.slane %v589, 0
    %v627 = vadd.f32 %v623, %v625
    %v628 = vmul.f32 %v627, 0.01
    %v629 = vmax.f32 %v627, %v628
    %v630 = vld [vmem:[%s59] sm:$0xff]
    %v631 = vld [vmem:[%s59 + $0x8] sm:$0xff]
    %v632 = vld [vmem:[%s59 + $0x10] sm:$0xff]
    %v633 = vld [vmem:[%s59 + $0x18] sm:$0xff]
    %v634 = vld [vmem:[%s61] sm:$0x1]
    %v636 = vperm.slane %v634, 0
    %v639 = vsel %vm341, %v629, 0
    %641 = vmatpush.msra.mxu0 0.0
    %642 = vmatpush.msra.mxu0 0.0
    %643 = vmatpush.msra.mxu0 0.0
    %644 = vmatpush.msra.mxu0 0.0
    %645 = vmatpush.msra.mxu0 0.0
    %646 = vmatpush.msra.mxu0 0.0
    %647 = vmatpush.msra.mxu0 0.0
    %648 = vmatpush.msra.mxu0 0.0
    %649 = vmatpush.msra.mxu0 0.0
    %650 = vmatpush.msra.mxu0 0.0
    %651 = vmatpush.msra.mxu0 0.0
    %652 = vmatpush.msra.mxu0 0.0
    %653 = vmatpush.msra.mxu0 %v633
    %654 = vmatpush.msra.mxu0 %v632
    %655 = vmatpush.msra.mxu0 %v631
    %656 = vmatpush.msra.mxu0 %v630
    %657 = vmatmul.f32.gmra.mxu0 %v639
    %v658 = vpop.f32.mrf.mxu0
    %v659 = vadd.f32 %v636, %v658
    %660 = vdwg.mxu0
    %v661 = vld [vmem:[%s63] sm:$0x1]
    %v662 = vld [vmem:[%s65] sm:$0x1]
    %v663 = vsel %vm447, %v659, 0.0
    %v664 = vrot.slane %v663, 4
    %v665 = vadd.f32 %v663, %v664
    %v666 = vrot.slane %v665, 2
    %v667 = vadd.f32 %v665, %v666
    %v668 = vrot.slane %v667, 1
    %v669 = vadd.f32 %v667, %v668
    %v670 = vmul.f32 %v669, %v380
    %v671 = vsub.f32 %v659, %v670
    %v672 = vmul.f32 %v671, %v671
    %v673 = vsel %vm447, %v672, 0.0
    %v674 = vrot.slane %v673, 4
    %v675 = vadd.f32 %v673, %v674
    %v676 = vrot.slane %v675, 2
    %v677 = vadd.f32 %v675, %v676
    %v678 = vrot.slane %v677, 1
    %v679 = vadd.f32 %v677, %v678
    %v680 = vmul.f32 %v679, %v380
    %v681 = vadd.f32 %v680, 1e-05
    %v682 = vrsqrt.pop %v681
    %v683 = vmul.f32 %v682, %v681
    %v684 = vmul.f32 %v683, %v682
    %v685 = vmul.f32 0.5, %v684
    %v686 = vsub.f32 1.5, %v685
    %v687 = vmul.f32 %v682, %v686
    %vm688 = vweird.f32 %v681
    %vm689 = vweird.f32 %v682
    %vm690 = vmor %vm688, %vm689
    %v691 = vsel %vm690, %v682, %v687
    %v692 = vmul.f32 %v671, %v691
    %v694 = vperm.slane %v661, 0
    %v696 = vmul.f32 %v692, %v694
    %v698 = vperm.slane %v662, 0
    %v700 = vadd.f32 %v696, %v698
    %v701 = vmul.f32 %v700, 0.01
    %v702 = vmax.f32 %v700, %v701
    %v703 = vld [vmem:[%s67] sm:$0xff]
    %v704 = vld [vmem:[%s67 + $0x8] sm:$0xff]
    %v705 = vld [vmem:[%s69] sm:$0x1]
    %v707 = vperm.slane %v705, 0
    %v710 = vsel %vm447, %v702, 0
    %712 = vmatpush.msra.mxu0 0.0
    %713 = vmatpush.msra.mxu0 0.0
    %714 = vmatpush.msra.mxu0 0.0
    %715 = vmatpush.msra.mxu0 0.0
    %716 = vmatpush.msra.mxu0 0.0
    %717 = vmatpush.msra.mxu0 0.0
    %718 = vmatpush.msra.mxu0 0.0
    %719 = vmatpush.msra.mxu0 0.0
    %720 = vmatpush.msra.mxu0 0.0
    %721 = vmatpush.msra.mxu0 0.0
    %722 = vmatpush.msra.mxu0 0.0
    %723 = vmatpush.msra.mxu0 0.0
    %724 = vmatpush.msra.mxu0 0.0
    %725 = vmatpush.msra.mxu0 0.0
    %726 = vmatpush.msra.mxu0 %v704
    %727 = vmatpush.msra.mxu0 %v703
    %728 = vmatmul.f32.gmra.mxu0 %v710
    %v729 = vpop.f32.mrf.mxu0
    %v730 = vadd.f32 %v707, %v729
    %731 = vdwg.mxu0
    %v732 = vsub.f32 0.0, %v730
    %v733 = vmul.f32 %v732, 1.442695
    %v734 = vpow.pop %v733
    %736 = vrot.lane.b32.xlu0 %v734, 120
    %v737 = vpop.permute.xlu0 %736
    %v739 = vmul.f32 %v730, %v737
    %v740 = vrcp.pop %v328
    %v741 = vmul.f32 %v328, %v740
    %v742 = vsub.f32 1.0, %v741
    %v743 = vmul.f32 %v740, %v742
    %v744 = vadd.f32 %v740, %v743
    %vm745 = vweird.f32 %v328
    %vm746 = vweird.f32 %v740
    %vm747 = vmor %vm745, %vm746
    %v748 = vsel %vm747, %v740, %v744
    %v749 = vand.u32 2147483647, %v328
    %vm750 = vcmp.eq.f32.partialorder %v749, 8.507059e+37
    %v751 = vand.u32 %v328, 2147483648
    %v752 = vor.u32 1.1754944e-38, %v751
    %v753 = vsel %vm750, %v752, %v748
    %v754 = vmul.f32 1.0, %v753
    %v755 = vmul.f32 %v327, %v754
    %v756 = vlog2.pop %v328
    %v757 = vmul.f32 %v756, 0.6931472
    %v759 = vperm.slane %v754, 0
    %v762 = vperm.slane %v755, 0
    %v764 = vld [vmem:[%s5] sm:$0xff]
    %v765 = vld [vmem:[%s5 + $0x8] sm:$0xff]
    %v766 = vld [vmem:[%s5 + $0x10] sm:$0xff]
    %v767 = vadd.f32 %v759, %v737
    %v768 = vadd.f32 %v762, %v739
    %v769 = vrsqrt.pop %v767
    %v770 = vmul.f32 %v769, %v767
    %v771 = vmul.f32 %v770, %v769
    %v772 = vmul.f32 0.5, %v771
    %v773 = vsub.f32 1.5, %v772
    %v774 = vmul.f32 %v769, %v773
    %vm775 = vweird.f32 %v767
    %vm776 = vweird.f32 %v769
    %vm777 = vmor %vm775, %vm776
    %v778 = vsel %vm777, %v769, %v774
    %v779 = vmul.f32 %v778, %v778
    %v780 = vmul.f32 %v768, %v779
    %v781 = vlog2.pop %v767
    %v782 = vmul.f32 %v781, 0.6931472
    %v783 = vsub.f32 0.0, %v782
    %v785 = vperm.slane %v327, 0
    %v787 = vsub.f32 %v785, %v780
    %v788 = vmul.f32 %v779, %v759
    %v789 = vmul.f32 %v787, %v787
    %v790 = vmul.f32 %v789, %v759
    %v791 = vadd.f32 %v788, %v790
    %v792 = vsub.f32 %v791, 8.0
    %v794 = vperm.slane %v757, 0
    %v796 = vadd.f32 %v792, %v794
    %v797 = vsub.f32 %v796, %v783
    %v798 = vadd.f32 %v797, 0.0
    %v799 = vmul.f32 %v764, %v778
    %v800 = vadd.f32 %v799, %v780
    %vm801 = vcmask 64512
    %802 = vst.msk [vmem:[#allocation2] sm:$0xff] %vm801, %v800
    %v803 = vadd.f32 %v759, %v522
    %v804 = vadd.f32 %v762, %v524
    %v805 = vrsqrt.pop %v803
    %v806 = vmul.f32 %v805, %v803
    %v807 = vmul.f32 %v806, %v805
    %v808 = vmul.f32 0.5, %v807
    %v809 = vsub.f32 1.5, %v808
    %v810 = vmul.f32 %v805, %v809
    %vm811 = vweird.f32 %v803
    %vm812 = vweird.f32 %v805
    %vm813 = vmor %vm811, %vm812
    %v814 = vsel %vm813, %v805, %v810
    %v815 = vmul.f32 %v814, %v814
    %v816 = vmul.f32 %v804, %v815
    %v817 = vlog2.pop %v803
    %v818 = vmul.f32 %v817, 0.6931472
    %v819 = vsub.f32 0.0, %v818
    %v820 = vsub.f32 %v785, %v816
    %v821 = vmul.f32 %v815, %v759
    %v822 = vmul.f32 %v820, %v820
    %v823 = vmul.f32 %v822, %v759
    %v824 = vadd.f32 %v821, %v823
    %v825 = vsub.f32 %v824, 8.0
    %v826 = vadd.f32 %v825, %v794
    %v827 = vsub.f32 %v826, %v819
    %v828 = vadd.f32 %v798, %v827
    %v829 = vmul.f32 %v765, %v814
    %v830 = vadd.f32 %v829, %v816
    %831 = vst.msk [vmem:[#allocation2 + $0x8] sm:$0xff] %vm801, %v830
    %v832 = vadd.f32 %v803, %v737
    %v833 = vadd.f32 %v804, %v739
    %v834 = vrsqrt.pop %v832
    %v835 = vmul.f32 %v834, %v832
    %v836 = vmul.f32 %v835, %v834
    %v837 = vmul.f32 0.5, %v836
    %v838 = vsub.f32 1.5, %v837
    %v839 = vmul.f32 %v834, %v838
    %vm840 = vweird.f32 %v832
    %vm841 = vweird.f32 %v834
    %vm842 = vmor %vm840, %vm841
    %v843 = vsel %vm842, %v834, %v839
    %v844 = vmul.f32 %v843, %v843
    %v845 = vmul.f32 %v833, %v844
    %v846 = vlog2.pop %v832
    %v847 = vmul.f32 %v846, 0.6931472
    %v848 = vsub.f32 0.0, %v847
    %v849 = vsub.f32 %v785, %v845
    %v850 = vmul.f32 %v844, %v759
    %v851 = vmul.f32 %v849, %v849
    %v852 = vmul.f32 %v851, %v759
    %v853 = vadd.f32 %v850, %v852
    %v854 = vsub.f32 %v853, 8.0
    %v855 = vadd.f32 %v854, %v794
    %v856 = vsub.f32 %v855, %v848
    %v857 = vadd.f32 %v828, %v856
    %v858 = vmul.f32 %v766, %v843
    %v859 = vadd.f32 %v858, %v845
    %860 = vst.msk [vmem:[#allocation2 + $0x10] sm:$0xff] %vm801, %v859
    %v861 = vld [vmem:[#allocation2] sm:$0xff]
    %v862 = vld [vmem:[#allocation2 + $0x8] sm:$0xff]
    %v863 = vld [vmem:[#allocation2 + $0x10] sm:$0xff]
    %v864 = vsel %vm801, %v861, -inf
    %865 = vmax.xlane.f32.xlu0 %v864
    %v866 = vpop.xlane.xlu0 %865
    %v867 = vsel %vm801, %v862, -inf
    %868 = vmax.xlane.f32.xlu0 %v867
    %v869 = vpop.xlane.xlu0 %868
    %v870 = vsel %vm801, %v863, -inf
    %871 = vmax.xlane.f32.xlu0 %v870
    %v872 = vpop.xlane.xlu0 %871
    %v873 = vsub.f32 %v861, %v866
    %v874 = vsub.f32 %v862, %v869
    %v875 = vsub.f32 %v863, %v872
    %v876 = vmul.f32 %v873, 1.442695
    %v877 = vpow.pop %v876
    %v878 = vmul.f32 %v874, 1.442695
    %v879 = vpow.pop %v878
    %v880 = vmul.f32 %v875, 1.442695
    %v881 = vpow.pop %v880
    %v882 = vsel %vm801, %v877, 0.0
    %883 = vadd.xlane.f32.xlu0 %v882
    %v884 = vpop.xlane.xlu0 %883
    %v885 = vsel %vm801, %v879, 0.0
    %886 = vadd.xlane.f32.xlu0 %v885
    %v887 = vpop.xlane.xlu0 %886
    %v888 = vsel %vm801, %v881, 0.0
    %889 = vadd.xlane.f32.xlu0 %v888
    %v890 = vpop.xlane.xlu0 %889
    %v891 = vrcp.pop %v884
    %v892 = vmul.f32 %v884, %v891
    %v893 = vsub.f32 1.0, %v892
    %v894 = vmul.f32 %v891, %v893
    %v895 = vadd.f32 %v891, %v894
    %vm896 = vweird.f32 %v884
    %vm897 = vweird.f32 %v891
    %vm898 = vmor %vm896, %vm897
    %v899 = vsel %vm898, %v891, %v895
    %v900 = vand.u32 2147483647, %v884
    %vm901 = vcmp.eq.f32.partialorder %v900, 8.507059e+37
    %v902 = vand.u32 %v884, 2147483648
    %v903 = vor.u32 1.1754944e-38, %v902
    %v904 = vsel %vm901, %v903, %v899
    %v905 = vmul.f32 %v877, %v904
    %v906 = vrcp.pop %v887
    %v907 = vmul.f32 %v887, %v906
    %v908 = vsub.f32 1.0, %v907
    %v909 = vmul.f32 %v906, %v908
    %v910 = vadd.f32 %v906, %v909
    %vm911 = vweird.f32 %v887
    %vm912 = vweird.f32 %v906
    %vm913 = vmor %vm911, %vm912
    %v914 = vsel %vm913, %v906, %v910
    %v915 = vand.u32 2147483647, %v887
    %vm916 = vcmp.eq.f32.partialorder %v915, 8.507059e+37
    %v917 = vand.u32 %v887, 2147483648
    %v918 = vor.u32 1.1754944e-38, %v917
    %v919 = vsel %vm916, %v918, %v914
    %v920 = vmul.f32 %v879, %v919
    %v921 = vrcp.pop %v890
    %v922 = vmul.f32 %v890, %v921
    %v923 = vsub.f32 1.0, %v922
    %v924 = vmul.f32 %v921, %v923
    %v925 = vadd.f32 %v921, %v924
    %vm926 = vweird.f32 %v890
    %vm927 = vweird.f32 %v921
    %vm928 = vmor %vm926, %vm927
    %v929 = vsel %vm928, %v921, %v925
    %v930 = vand.u32 2147483647, %v890
    %vm931 = vcmp.eq.f32.partialorder %v930, 8.507059e+37
    %v932 = vand.u32 %v890, 2147483648
    %v933 = vor.u32 1.1754944e-38, %v932
    %v934 = vsel %vm931, %v933, %v929
    %v935 = vmul.f32 %v881, %v934
    %v936 = vld [vmem:[#allocation8] sm:$0xff]
    %v938 = vsel %vm801, %v905, 0
    %v941 = vsel %vm801, %v920, 0
    %v944 = vsel %vm801, %v935, 0
    %946 = vmatpush.msra.mxu0 0.0
    %947 = vmatpush.msra.mxu0 0.0
    %948 = vmatpush.msra.mxu0 0.0
    %949 = vmatpush.msra.mxu0 0.0
    %950 = vmatpush.msra.mxu0 0.0
    %951 = vmatpush.msra.mxu0 0.0
    %952 = vmatpush.msra.mxu0 0.0
    %953 = vmatpush.msra.mxu0 0.0
    %954 = vmatpush.msra.mxu0 0.0
    %955 = vmatpush.msra.mxu0 0.0
    %956 = vmatpush.msra.mxu0 0.0
    %957 = vmatpush.msra.mxu0 0.0
    %958 = vmatpush.msra.mxu0 0.0
    %959 = vmatpush.msra.mxu0 0.0
    %960 = vmatpush.msra.mxu0 0.0
    %961 = vmatpush.msra.mxu0 %v936
    %962 = vmatmul.f32.gmra.mxu0 %v938
    %v963 = vpop.f32.mrf.mxu0
    %964 = vmatmul.f32.gmra.mxu0 %v941
    %v965 = vpop.f32.mrf.mxu0
    %v966 = vadd.f32 0.0, %v965
    %967 = vmatmul.f32.gmra.mxu0 %v944
    %v968 = vpop.f32.mrf.mxu0
    %v969 = vadd.f32 0.0, %v968
    %970 = vdwg.mxu0
    %v971 = vld [vmem:[%s9] sm:$0xff]
    %v972 = vld [vmem:[#allocation9] sm:$0x3]
    %974 = vset.pattern.permute.xlu0 0
    %975 = vperm.xlu0 %974, %v971
    %v976 = vpop.permute.xlu0 %975
    %v978 = vperm.slane %v972, 0
    %v979 = vmul.f32 %v976, %v978
    %980 = vset.pattern.permute.xlu0 1
    %981 = vperm.xlu0 %980, %v971
    %v982 = vpop.permute.xlu0 %981
    %v984 = vperm.slane %v972, 1
    %v985 = vmul.f32 %v982, %v984
    %v986 = vadd.f32 %v979, %v985
    %v987 = vadd.f32 %v986, 1.0
    %v988 = vld [vmem:[%s13] sm:$0x3]
    %v989 = vperm.slane %v988, 0
    %v990 = vmul.f32 %v976, %v989
    %v991 = vperm.slane %v988, 1
    %v992 = vmul.f32 %v982, %v991
    %v993 = vadd.f32 %v990, %v992
    %v994 = vmul.f32 %v966, %v987
    %v995 = vadd.f32 %v994, %v993
    %v996 = vsel %vm341, %v995, -inf
    %997 = vmax.xlane.f32.xlu0 %v996
    %v998 = vpop.xlane.xlu0 %997
    %v999 = vsub.f32 %v995, %v998
    %v1000 = vmul.f32 %v999, 1.442695
    %v1001 = vpow.pop %v1000
    %v1002 = vsel %vm341, %v1001, 0.0
    %1003 = vadd.xlane.f32.xlu0 %v1002
    %v1004 = vpop.xlane.xlu0 %1003
    %v1005 = vlog2.pop %v1004
    %v1006 = vmul.f32 %v1005, 0.6931472
    %v1007 = vadd.f32 %v1006, %v998
    %v1008 = vmul.f32 %v969, %v987
    %v1009 = vadd.f32 %v1008, %v993
    %v1010 = vadd.f32 %v995, %v1009
    %v1011 = vsel %vm341, %v1009, -inf
    %1012 = vmax.xlane.f32.xlu0 %v1011
    %v1013 = vpop.xlane.xlu0 %1012
    %v1014 = vsub.f32 %v1009, %v1013
    %v1015 = vmul.f32 %v1014, 1.442695
    %v1016 = vpow.pop %v1015
    %v1017 = vsel %vm341, %v1016, 0.0
    %1018 = vadd.xlane.f32.xlu0 %v1017
    %v1019 = vpop.xlane.xlu0 %1018
    %v1020 = vlog2.pop %v1019
    %v1021 = vmul.f32 %v1020, 0.6931472
    %v1022 = vadd.f32 %v1021, %v1013
    %v1023 = vadd.f32 %v1007, %v1022
    %v1024 = vsel %vm341, %v329, 0.0
    %1025 = vadd.xlane.f32.xlu0 %v1024
    %v1026 = vpop.xlane.xlu0 %1025
    %v1027 = vmul.f32 %v1026, %v1023
    %vm1028 = vcmask 7168
    %v1029 = vsel %vm1028, %v1027, 0.0
    %1030 = vadd.xlane.f32.xlu0 %v1029
    %v1031 = vpop.xlane.xlu0 %1030
    %v1032 = vrot.slane %v1031, 4
    %v1033 = vadd.f32 %v1031, %v1032
    %v1034 = vrot.slane %v1033, 2
    %v1035 = vadd.f32 %v1033, %v1034
    %v1036 = vrot.slane %v1035, 1
    %v1037 = vadd.f32 %v1035, %v1036
    %s1038 = vtos %v1037
    %v1039 = vmul.f32 %v329, %v1010
    %v1040 = vsel %vm341, %v1039, 0.0
    %1041 = vadd.xlane.f32.xlu0 %v1040
    %v1042 = vpop.xlane.xlu0 %1041
    %v1043 = vrot.slane %v1042, 4
    %v1044 = vadd.f32 %v1042, %v1043
    %v1045 = vrot.slane %v1044, 2
    %v1046 = vadd.f32 %v1044, %v1045
    %v1047 = vrot.slane %v1046, 1
    %v1048 = vadd.f32 %v1046, %v1047
    %s1049 = vtos %v1048
    %s1050 = ssub.f32 %s1038, %s1049
    %s1051 = sadd.f32 %s1050, 0.0
    %v1052 = vld [vmem:[%s43] sm:$0xff]
    %1053 = vmatpush.msra.mxu0 0.0
    %1054 = vmatpush.msra.mxu0 0.0
    %1055 = vmatpush.msra.mxu0 0.0
    %1056 = vmatpush.msra.mxu0 0.0
    %1057 = vmatpush.msra.mxu0 0.0
    %1058 = vmatpush.msra.mxu0 0.0
    %1059 = vmatpush.msra.mxu0 0.0
    %1060 = vmatpush.msra.mxu0 0.0
    %1061 = vmatpush.msra.mxu0 0.0
    %1062 = vmatpush.msra.mxu0 0.0
    %1063 = vmatpush.msra.mxu0 0.0
    %1064 = vmatpush.msra.mxu0 0.0
    %1065 = vmatpush.msra.mxu0 0.0
    %1066 = vmatpush.msra.mxu0 0.0
    %1067 = vmatpush.msra.mxu0 0.0
    %1068 = vmatpush.msra.mxu0 %v1052
    %1069 = vmatmul.f32.gmra.mxu0 %v938
    %v1070 = vpop.f32.mrf.mxu0
    %v1071 = vadd.f32 0.0, %v1070
    %1072 = vmatmul.f32.gmra.mxu0 %v941
    %v1073 = vpop.f32.mrf.mxu0
    %1074 = vmatmul.f32.gmra.mxu0 %v944
    %v1075 = vpop.f32.mrf.mxu0
    %v1076 = vadd.f32 0.0, %v1075
    %1077 = vdwg.mxu0
    %v1078 = vld [vmem:[%s41] sm:$0xff]
    %v1079 = vld [vmem:[#allocation23] sm:$0x7]
    %1081 = vset.pattern.permute.xlu0 0
    %1082 = vperm.xlu0 %1081, %v1078
    %v1083 = vpop.permute.xlu0 %1082
    %v1085 = vperm.slane %v1079, 0
    %v1086 = vmul.f32 %v1083, %v1085
    %1087 = vset.pattern.permute.xlu0 1
    %1088 = vperm.xlu0 %1087, %v1078
    %v1089 = vpop.permute.xlu0 %1088
    %v1091 = vperm.slane %v1079, 1
    %v1092 = vmul.f32 %v1089, %v1091
    %v1093 = vadd.f32 %v1086, %v1092
    %1094 = vset.pattern.permute.xlu0 2
    %1095 = vperm.xlu0 %1094, %v1078
    %v1096 = vpop.permute.xlu0 %1095
    %v1098 = vperm.slane %v1079, 2
    %v1099 = vmul.f32 %v1096, %v1098
    %v1100 = vadd.f32 %v1093, %v1099
    %v1101 = vadd.f32 %v1100, 1.0
    %v1102 = vld [vmem:[#allocation21] sm:$0x7]
    %v1103 = vperm.slane %v1102, 0
    %v1104 = vmul.f32 %v1083, %v1103
    %v1105 = vperm.slane %v1102, 1
    %v1106 = vmul.f32 %v1089, %v1105
    %v1107 = vadd.f32 %v1104, %v1106
    %v1108 = vperm.slane %v1102, 2
    %v1109 = vmul.f32 %v1096, %v1108
    %v1110 = vadd.f32 %v1107, %v1109
    %v1111 = vmul.f32 %v1071, %v1101
    %v1112 = vadd.f32 %v1111, %v1110
    %v1113 = vmax.f32 %v1112, 0.0
    %v1114 = vand.u32 2147483647, %v1112
    %v1115 = vsub.f32 0.0, %v1114
    %v1116 = vmul.f32 %v1115, 1.442695
    %v1117 = vpow.pop %v1116
    %v1118 = vadd.f32 %v1117, 1.0
    %v1119 = vlog2.pop %v1118
    %v1120 = vmul.f32 %v1119, 0.6931472
    %v1121 = vadd.f32 %v1113, %v1120
    %v1122 = vmul.f32 %v1076, %v1101
    %v1123 = vadd.f32 %v1122, %v1110
    %v1124 = vadd.f32 %v1112, %v1123
    %v1125 = vmax.f32 %v1123, 0.0
    %v1126 = vand.u32 2147483647, %v1123
    %v1127 = vsub.f32 0.0, %v1126
    %v1128 = vmul.f32 %v1127, 1.442695
    %v1129 = vpow.pop %v1128
    %v1130 = vadd.f32 %v1129, 1.0
    %v1131 = vlog2.pop %v1130
    %v1132 = vmul.f32 %v1131, 0.6931472
    %v1133 = vadd.f32 %v1125, %v1132
    %v1134 = vadd.f32 %v1121, %v1133
    %v1135 = vmul.f32 %v531, %v1134
    %v1136 = vmul.f32 %v525, %v1124
    %v1137 = vsub.f32 %v1135, %v1136
    %v1138 = vsel %vm447, %v1137, 0.0
    %1139 = vadd.xlane.f32.xlu0 %v1138
    %v1140 = vpop.xlane.xlu0 %1139
    %v1141 = vrot.slane %v1140, 4
    %v1142 = vadd.f32 %v1140, %v1141
    %v1143 = vrot.slane %v1142, 2
    %v1144 = vadd.f32 %v1142, %v1143
    %v1145 = vrot.slane %v1144, 1
    %v1146 = vadd.f32 %v1144, %v1145
    %s1147 = vtos %v1146
    %s1148 = sadd.f32 %s1051, %s1147
    %v1149 = vsel %vm801, %v857, 0.0
    %1150 = vadd.xlane.f32.xlu0 %v1149
    %v1151 = vpop.xlane.xlu0 %1150
    %v1152 = vrot.slane %v1151, 4
    %v1153 = vadd.f32 %v1151, %v1152
    %v1154 = vrot.slane %v1153, 2
    %v1155 = vadd.f32 %v1153, %v1154
    %v1156 = vrot.slane %v1155, 1
    %v1157 = vadd.f32 %v1155, %v1156
    %s1158 = vtos %v1157
    %s1159 = smul.f32 %s1158, 0.5
    %s1160 = scalar_lea.smem [#allocation24], 0
    %1161 = sst [smem:[%s1160]] %s1159
    %s1162 = scalar_lea.smem [#allocation25], 0
    %1163 = sst [smem:[%s1162]] %s1148
    // Predicated region
    $region194: #{tpu_custom_call.1} parent=1 // pred_check
      _
    $region195: #{tpu_custom_call.1} parent=1 // pred_check_branch
      %1165 = sbr.rel (0) target = $region197
    $region196: #{tpu_custom_call.1} parent=1 // pred_region
      %1167 = vsyncadd [#allocation5], 0
      %s1169 = sshll.u32 %s71, 4
      %s1170 = int_to_ptr.hbm [resolvable:$true] %s1169
      %1172 = dma.smem_to_hbm [#allocation24], 16, %s1170, [#allocation5]
    $region197: #{tpu_custom_call.1} parent=1 // pred_fallthru
      _
    // Predicated region
    $region198: #{tpu_custom_call.1} parent=1 // pred_check
      _
    $region199: #{tpu_custom_call.1} parent=1 // pred_check_branch
      %1174 = sbr.rel (0) target = $region201
    $region200: #{tpu_custom_call.1} parent=1 // pred_region
      %1176 = vsyncadd [#allocation26], 0
      %s1178 = sshll.u32 %s73, 4
      %s1179 = int_to_ptr.hbm [resolvable:$true] %s1178
      %1181 = dma.smem_to_hbm [#allocation25], 16, %s1179, [#allocation26]
    $region201: #{tpu_custom_call.1} parent=1 // pred_fallthru
      _
    // Predicated region
    $region202: #{tpu_custom_call.1} parent=1 // pred_check
      _
    $region203: #{tpu_custom_call.1} parent=1 // pred_check_branch
      %1183 = sbr.rel (0) target = $region205
    $region204: #{tpu_custom_call.1} parent=1 // pred_region
      %1185 = dma.done [#allocation5], 16
    $region205: #{tpu_custom_call.1} parent=1 // pred_fallthru
      _
    // Predicated region
    $region206: #{tpu_custom_call.1} parent=1 // pred_check
      _
    $region207: #{tpu_custom_call.1} parent=1 // pred_check_branch
      %1187 = sbr.rel (0) target = $region209
    $region208: #{tpu_custom_call.1} parent=1 // pred_region
      %1189 = dma.done [#allocation26], 16
    $region209: #{tpu_custom_call.1} parent=1 // pred_fallthru
      _
    %1190 = sfence
    %1191 = vsyncpa [#allocation4], 1
    %1192 = vsyncpa [#allocation7], 1
    %1193 = vsyncpa [#allocation10], 1
    %1194 = vsyncpa [#allocation13], 1
    %1195 = vsyncpa [#allocation16], 1
    %1196 = vsyncpa [#allocation19], 1
    %1197 = vsyncpa [#allocation22], 1
    %1198 = vsyncpa [#allocation5], 1
    %1199 = vsyncpa [#allocation26], 1

</llo_original>
